<compile_context>
chip_gen: v7x
topology: tpu7x:2x2x1
jax: 0.10.0
libtpu: 0.0.40
codegen_flags: <defaults>
</compile_context>

<pallas_src>
import functools

import jax
import jax.numpy as jnp
from jax.experimental import pallas as pl
from jax.experimental.pallas import tpu as pltpu


# ---------------------------------------------------------------------------
# Kernel: one batch element per grid step.
#   conv1(3x3, stride) + bn1 + relu  ->  conv2(3x3) + bn2  -> (+ shortcut) -> relu
# xs2b holds the padded input in space-to-batch form:
#   xs2b[0, a, b, i, j, c] == x_pad[i*s + a, j*s + b, c]
# so every strided 3x3 tap is a plain static slice.
# ---------------------------------------------------------------------------
def _basic_block_kernel(*refs, stride, Ho, Wo, Wo_pad, Cin, P, proj):
    if proj:
        (x_ref, w1_ref, b1_ref, w2_ref, b2_ref, ws_ref, bs_ref,
         out_ref, pad_ref) = refs
    else:
        x_ref, w1_ref, b1_ref, w2_ref, b2_ref, out_ref, pad_ref = refs

    s = stride
    M = Ho * Wo_pad

    # ---- zero only the halo of the conv2 scratch (interior is overwritten) --
    pad_ref[0:1, :, :] = jnp.zeros((1, Wo_pad + 2, P), pad_ref.dtype)
    pad_ref[Ho + 1:Ho + 2, :, :] = jnp.zeros((1, Wo_pad + 2, P), pad_ref.dtype)
    pad_ref[1:Ho + 1, 0:1, :] = jnp.zeros((Ho, 1, P), pad_ref.dtype)
    pad_ref[1:Ho + 1, Wo + 1:Wo_pad + 2, :] = jnp.zeros(
        (Ho, Wo_pad + 1 - Wo, P), pad_ref.dtype)

    # ---- conv1 (3x3, stride) + folded bn1 + relu: single K=9*Cin matmul ----
    cols = []
    for dy in range(3):
        for dx in range(3):
            cols.append(x_ref[0, dy % s, dx % s,
                              dy // s: dy // s + Ho,
                              dx // s: dx // s + Wo_pad, :])   # (Ho,Wo_pad,Cin) bf16
    patch1 = jnp.concatenate(cols, axis=-1).reshape(M, 9 * Cin)
    out1 = jnp.dot(patch1, w1_ref[...], preferred_element_type=jnp.float32)
    out1 = jnp.maximum(out1 + b1_ref[0], 0.0)                  # (M, P) f32

    # stash valid conv1 output (bf16) into the zero-halo scratch for conv2
    pad_ref[1:Ho + 1, 1:Wo + 1, :] = (
        out1.reshape(Ho, Wo_pad, P)[:, :Wo, :].astype(pad_ref.dtype))

    # ---- conv2 (3x3, stride 1) + folded bn2: single K=9*P matmul -----------
    cols2 = []
    for dy in range(3):
        for dx in range(3):
            cols2.append(pad_ref[dy:dy + Ho, dx:dx + Wo_pad, :])
    patch2 = jnp.concatenate(cols2, axis=-1).reshape(M, 9 * P)
    out2 = jnp.dot(patch2, w2_ref[...],
                   preferred_element_type=jnp.float32) + b2_ref[0]

    # ---- shortcut: reuse the (1,1) tap of the conv1 input (no extra DMA) ---
    xs = x_ref[0, 1 % s, 1 % s,
               1 // s: 1 // s + Ho,
               1 // s: 1 // s + Wo_pad, :].reshape(M, Cin)
    if proj:
        sc = jnp.dot(xs, ws_ref[...],
                     preferred_element_type=jnp.float32) + bs_ref[0]
    else:
        sc = xs.astype(jnp.float32)          # identity: Cin == P, stride == 1

    # ---- residual add + relu ------------------------------------------------
    out = jnp.maximum(out2 + sc, 0.0).reshape(Ho, Wo_pad, P)
    out_ref[0] = out[:, :Wo, :].astype(out_ref.dtype)


# ---------------------------------------------------------------------------
# Wrapper (NCHW in / NCHW out, like the PyTorch module)
# ---------------------------------------------------------------------------
def _fold_bn_into_conv(w_oihw, gamma, beta, mean, var, eps=1e-5):
    scale = gamma * jax.lax.rsqrt(var + eps)          # per output channel
    bias = beta - mean * scale
    return w_oihw * scale[:, None, None, None], bias


@functools.partial(jax.jit, static_argnames=("stride",))
def basic_block_forward(x_nchw, params, stride):
    in_planes = x_nchw.shape[1]
    planes = params["w1"].shape[0]
    proj = (stride != 1) or (in_planes != planes)
    s = stride

    # NCHW -> NHWC; bf16 matmul operands (halves HBM/VMEM bytes, MXU-native).
    x = jnp.transpose(x_nchw, (0, 2, 3, 1)).astype(jnp.bfloat16)
    N, H, W, Cin = x.shape
    P = planes
    Ho = (H - 1) // s + 1
    Wo = (W - 1) // s + 1
    # Pad to the bf16 sublane-pack tile (16) so the in-kernel
    # (Ho, Wo_pad, C) <-> (Ho*Wo_pad, C) reshapes never force a relayout.
    Wo_pad = -(-Wo // 16) * 16

    # conv padding=1, then pad up so space-to-batch divides evenly and every
    # 3x3 tap window of shape (Ho, Wo_pad) stays in bounds.
    xp = jnp.pad(x, ((0, 0), (1, 1), (1, 1), (0, 0)))
    Hp, Wp = H + 2, W + 2
    Hq = max(2 // s + Ho, -(-Hp // s))
    Wq = max(2 // s + Wo_pad, -(-Wp // s))
    xp = jnp.pad(xp, ((0, 0), (0, Hq * s - Hp), (0, Wq * s - Wp), (0, 0)))
    # TODO(synk): this space-to-batch transpose is one extra HBM pass; an
    # NHWC-native API + strided in-kernel slices would remove it.
    xs2b = xp.reshape(N, Hq, s, Wq, s, Cin).transpose(0, 2, 4, 1, 3, 5)

    # BN scale folded into conv weights; only a bias add stays in-kernel.
    w1, b1 = _fold_bn_into_conv(params["w1"], *params["bn1"])
    w2, b2 = _fold_bn_into_conv(params["w2"], *params["bn2"])
    w1r = jnp.transpose(w1, (2, 3, 1, 0)).reshape(9 * Cin, P).astype(jnp.bfloat16)
    w2r = jnp.transpose(w2, (2, 3, 1, 0)).reshape(9 * P, P).astype(jnp.bfloat16)
    b1 = b1.reshape(1, P).astype(jnp.float32)
    b2 = b2.reshape(1, P).astype(jnp.float32)

    inputs = [xs2b, w1r, b1, w2r, b2]
    in_specs = [
        pl.BlockSpec((1, s, s, Hq, Wq, Cin), lambda n: (n, 0, 0, 0, 0, 0)),
        pl.BlockSpec((9 * Cin, P), lambda n: (0, 0)),
        pl.BlockSpec((1, P), lambda n: (0, 0)),
        pl.BlockSpec((9 * P, P), lambda n: (0, 0)),
        pl.BlockSpec((1, P), lambda n: (0, 0)),
    ]
    if proj:
        ws, bs = _fold_bn_into_conv(params["ws"], *params["bns"])
        wsr = jnp.transpose(ws, (2, 3, 1, 0)).reshape(Cin, P).astype(jnp.bfloat16)
        bs = bs.reshape(1, P).astype(jnp.float32)
        inputs += [wsr, bs]
        in_specs += [pl.BlockSpec((Cin, P), lambda n: (0, 0)),
                     pl.BlockSpec((1, P), lambda n: (0, 0))]

    kernel = functools.partial(_basic_block_kernel, stride=s, Ho=Ho, Wo=Wo,
                               Wo_pad=Wo_pad, Cin=Cin, P=P, proj=proj)

    # Advisory cost hint (MXU flops dominate; bytes = input stream + output).
    flops = 2 * N * Ho * Wo_pad * P * (9 * Cin + 9 * P + (Cin if proj else 0))
    bytes_accessed = (N * Hq * s * Wq * s * Cin * 2      # bf16 input blocks
                      + (9 * Cin + 9 * P + Cin) * P * 2  # bf16 weights
                      + N * Ho * Wo * P * 4)             # f32 output
    cost = pl.CostEstimate(flops=int(flops), transcendentals=0,
                           bytes_accessed=int(bytes_accessed))

    out_nhwc = pl.pallas_call(
        kernel,
        out_shape=jax.ShapeDtypeStruct((N, Ho, Wo, P), jnp.float32),
        grid=(N,),
        in_specs=in_specs,
        out_specs=pl.BlockSpec((1, Ho, Wo, P), lambda n: (n, 0, 0, 0)),
        scratch_shapes=[pltpu.VMEM((Ho + 2, Wo_pad + 2, P), jnp.bfloat16)],
        compiler_params=pltpu.CompilerParams(
            dimension_semantics=("parallel",),
            vmem_limit_bytes=48 * 1024 * 1024),
        cost_estimate=cost,
    )(*inputs)

    return jnp.transpose(out_nhwc, (0, 3, 1, 2))


# ---------------------------------------------------------------------------
# Pure-JAX f32 reference (same eval-mode BN semantics) for correctness check.
# ---------------------------------------------------------------------------
def basic_block_reference(x, params, stride):
    def conv(x, w, s, pad):
        return jax.lax.conv_general_dilated(
            x, w, (s, s), ((pad, pad), (pad, pad)),
            dimension_numbers=("NCHW", "OIHW", "NCHW"))

    def bn(x, g, b, m, v, eps=1e-5):
        g, b, m, v = (t[None, :, None, None] for t in (g, b, m, v))
        return (x - m) * jax.lax.rsqrt(v + eps) * g + b

    in_planes, planes = x.shape[1], params["w1"].shape[0]
    out = jax.nn.relu(bn(conv(x, params["w1"], stride, 1), *params["bn1"]))
    out = bn(conv(out, params["w2"], 1, 1), *params["bn2"])
    if stride != 1 or in_planes != planes:
        sc = bn(conv(x, params["ws"], stride, 0), *params["bns"])
    else:
        sc = x
    return jax.nn.relu(out + sc)


# ---------------------------------------------------------------------------
def _run_case(key, N, H, W, in_planes, planes, stride):
    ks = jax.random.split(key, 7)

    def bn_params(k, c):
        a, b, c_, d = jax.random.split(k, 4)
        return (1.0 + 0.1 * jax.random.normal(a, (c,), jnp.float32),
                0.1 * jax.random.normal(b, (c,), jnp.float32),
                0.1 * jax.random.normal(c_, (c,), jnp.float32),
                0.5 + jnp.abs(jax.random.normal(d, (c,), jnp.float32)))

    params = {
        "w1": 0.2 * jax.random.normal(ks[1], (planes, in_planes, 3, 3), jnp.float32),
        "bn1": bn_params(ks[2], planes),
        "w2": 0.2 * jax.random.normal(ks[3], (planes, planes, 3, 3), jnp.float32),
        "bn2": bn_params(ks[4], planes),
        "ws": 0.2 * jax.random.normal(ks[5], (planes, in_planes, 1, 1), jnp.float32),
        "bns": bn_params(ks[6], planes),
    }
    x = jax.random.normal(ks[0], (N, in_planes, H, W), jnp.float32)

    out = jax.block_until_ready(basic_block_forward(x, params, stride))
    ref = jax.block_until_ready(basic_block_reference(x, params, stride))

    Ho = (H - 1) // stride + 1
    Wo = (W - 1) // stride + 1
    assert out.shape == ref.shape == (N, planes, Ho, Wo)
    err = float(jnp.max(jnp.abs(out - ref)))
    scale = float(jnp.max(jnp.abs(ref))) + 1e-6
    # bf16 matmul operands (f32 accumulate) -> loosened tolerance vs f32 ref.
    assert err / scale < 3e-2, f"relative error {err / scale:.4f} (abs {err:.4f})"


if __name__ == "__main__":
    key = jax.random.PRNGKey(0)
    k1, k2, k3 = jax.random.split(key, 3)
    # projection shortcut (stride 2, channel change)
    _run_case(k1, N=2, H=16, W=16, in_planes=4, planes=8, stride=2)
    # identity shortcut (stride 1, same channels)
    _run_case(k2, N=2, H=16, W=16, in_planes=8, planes=8, stride=1)
    # output width not a multiple of the pad tile (exercises the Wo_pad path)
    _run_case(k3, N=2, H=14, W=14, in_planes=4, planes=8, stride=2)
    print("KERNEL_OK")
</pallas_src>

<mosaic_0001>
module attributes {stable_mosaic.version = 11 : i64} {
  func.func @_basic_block_kernel(%arg0: i32, %arg1: memref<1x2x2x9x17x4xbf16, #tpu.memory_space<vmem>>, %arg2: memref<36x8xbf16, #tpu.memory_space<vmem>>, %arg3: memref<1x8xf32, #tpu.memory_space<vmem>>, %arg4: memref<72x8xbf16, #tpu.memory_space<vmem>>, %arg5: memref<1x8xf32, #tpu.memory_space<vmem>>, %arg6: memref<4x8xbf16, #tpu.memory_space<vmem>>, %arg7: memref<1x8xf32, #tpu.memory_space<vmem>>, %arg8: memref<1x8x8x8xf32, #tpu.memory_space<vmem>>, %arg9: memref<10x18x8xbf16, #tpu.memory_space<vmem>>) attributes {dimension_semantics = [#tpu.dimension_semantics<parallel>], iteration_bounds = array<i64: 2>, scalar_prefetch = 0 : i64, scratch_operands = 1 : i64, tpu.core_type = #tpu.core_type<tc>, window_params = [{transform_indices = @transform_0, window_bounds = array<i64: 1, 2, 2, 9, 17, 4>}, {pipeline_mode = #tpu.pipeline_mode<synchronous>, transform_indices = @transform_1, window_bounds = array<i64: 36, 8>}, {pipeline_mode = #tpu.pipeline_mode<synchronous>, transform_indices = @transform_2, window_bounds = array<i64: 1, 8>}, {pipeline_mode = #tpu.pipeline_mode<synchronous>, transform_indices = @transform_3, window_bounds = array<i64: 72, 8>}, {pipeline_mode = #tpu.pipeline_mode<synchronous>, transform_indices = @transform_4, window_bounds = array<i64: 1, 8>}, {pipeline_mode = #tpu.pipeline_mode<synchronous>, transform_indices = @transform_5, window_bounds = array<i64: 4, 8>}, {pipeline_mode = #tpu.pipeline_mode<synchronous>, transform_indices = @transform_6, window_bounds = array<i64: 1, 8>}, {transform_indices = @transform_7, window_bounds = array<i64: 1, 8, 8, 8>}]} {
    %cst = arith.constant 0.000000e+00 : bf16
    %0 = vector.broadcast %cst : bf16 to vector<1x18x8xbf16>
    %c0 = arith.constant 0 : index
    %c0_0 = arith.constant 0 : index
    %c0_1 = arith.constant 0 : index
    %1 = vector.load %arg9[%c0, %c0_0, %c0_1] : memref<10x18x8xbf16, #tpu.memory_space<vmem>>, vector<1x18x8xbf16>
    tpu.vector_store %arg9[%c0, %c0_0, %c0_1], %0 {strides = array<i32>} : memref<10x18x8xbf16, #tpu.memory_space<vmem>>, vector<1x18x8xbf16>,
    %cst_2 = arith.constant 0.000000e+00 : bf16
    %2 = vector.broadcast %cst_2 : bf16 to vector<1x18x8xbf16>
    %c9 = arith.constant 9 : index
    %c0_3 = arith.constant 0 : index
    %c0_4 = arith.constant 0 : index
    %3 = vector.load %arg9[%c9, %c0_3, %c0_4] : memref<10x18x8xbf16, #tpu.memory_space<vmem>>, vector<1x18x8xbf16>
    tpu.vector_store %arg9[%c9, %c0_3, %c0_4], %2 {strides = array<i32>} : memref<10x18x8xbf16, #tpu.memory_space<vmem>>, vector<1x18x8xbf16>,
    %cst_5 = arith.constant 0.000000e+00 : bf16
    %4 = vector.broadcast %cst_5 : bf16 to vector<8x1x8xbf16>
    %c1 = arith.constant 1 : index
    %c0_6 = arith.constant 0 : index
    %c0_7 = arith.constant 0 : index
    %5 = vector.load %arg9[%c1, %c0_6, %c0_7] : memref<10x18x8xbf16, #tpu.memory_space<vmem>>, vector<8x1x8xbf16>
    tpu.vector_store %arg9[%c1, %c0_6, %c0_7], %4 {strides = array<i32>} : memref<10x18x8xbf16, #tpu.memory_space<vmem>>, vector<8x1x8xbf16>,
    %cst_8 = arith.constant 0.000000e+00 : bf16
    %6 = vector.broadcast %cst_8 : bf16 to vector<8x9x8xbf16>
    %c1_9 = arith.constant 1 : index
    %c9_10 = arith.constant 9 : index
    %c0_11 = arith.constant 0 : index
    %7 = vector.load %arg9[%c1_9, %c9_10, %c0_11] : memref<10x18x8xbf16, #tpu.memory_space<vmem>>, vector<8x9x8xbf16>
    tpu.vector_store %arg9[%c1_9, %c9_10, %c0_11], %6 {strides = array<i32>} : memref<10x18x8xbf16, #tpu.memory_space<vmem>>, vector<8x9x8xbf16>,
    %c0_12 = arith.constant 0 : index
    %c0_13 = arith.constant 0 : index
    %c0_14 = arith.constant 0 : index
    %c0_15 = arith.constant 0 : index
    %c0_16 = arith.constant 0 : index
    %c0_17 = arith.constant 0 : index
    %8 = vector.load %arg1[%c0_12, %c0_13, %c0_14, %c0_15, %c0_16, %c0_17] : memref<1x2x2x9x17x4xbf16, #tpu.memory_space<vmem>>, vector<1x1x1x8x16x4xbf16>
    %9 = vector.shape_cast %8 : vector<1x1x1x8x16x4xbf16> to vector<8x16x4xbf16>
    %c0_18 = arith.constant 0 : index
    %c0_19 = arith.constant 0 : index
    %c1_20 = arith.constant 1 : index
    %c0_21 = arith.constant 0 : index
    %c0_22 = arith.constant 0 : index
    %c0_23 = arith.constant 0 : index
    %10 = vector.load %arg1[%c0_18, %c0_19, %c1_20, %c0_21, %c0_22, %c0_23] : memref<1x2x2x9x17x4xbf16, #tpu.memory_space<vmem>>, vector<1x1x1x8x16x4xbf16>
    %11 = vector.shape_cast %10 : vector<1x1x1x8x16x4xbf16> to vector<8x16x4xbf16>
    %c0_24 = arith.constant 0 : index
    %c0_25 = arith.constant 0 : index
    %c0_26 = arith.constant 0 : index
    %c0_27 = arith.constant 0 : index
    %c1_28 = arith.constant 1 : index
    %c0_29 = arith.constant 0 : index
    %12 = vector.load %arg1[%c0_24, %c0_25, %c0_26, %c0_27, %c1_28, %c0_29] : memref<1x2x2x9x17x4xbf16, #tpu.memory_space<vmem>>, vector<1x1x1x8x16x4xbf16>
    %13 = vector.shape_cast %12 : vector<1x1x1x8x16x4xbf16> to vector<8x16x4xbf16>
    %c0_30 = arith.constant 0 : index
    %c1_31 = arith.constant 1 : index
    %c0_32 = arith.constant 0 : index
    %c0_33 = arith.constant 0 : index
    %c0_34 = arith.constant 0 : index
    %c0_35 = arith.constant 0 : index
    %14 = vector.load %arg1[%c0_30, %c1_31, %c0_32, %c0_33, %c0_34, %c0_35] : memref<1x2x2x9x17x4xbf16, #tpu.memory_space<vmem>>, vector<1x1x1x8x16x4xbf16>
    %15 = vector.shape_cast %14 : vector<1x1x1x8x16x4xbf16> to vector<8x16x4xbf16>
    %c0_36 = arith.constant 0 : index
    %c1_37 = arith.constant 1 : index
    %c1_38 = arith.constant 1 : index
    %c0_39 = arith.constant 0 : index
    %c0_40 = arith.constant 0 : index
    %c0_41 = arith.constant 0 : index
    %16 = vector.load %arg1[%c0_36, %c1_37, %c1_38, %c0_39, %c0_40, %c0_41] : memref<1x2x2x9x17x4xbf16, #tpu.memory_space<vmem>>, vector<1x1x1x8x16x4xbf16>
    %17 = vector.shape_cast %16 : vector<1x1x1x8x16x4xbf16> to vector<8x16x4xbf16>
    %c0_42 = arith.constant 0 : index
    %c1_43 = arith.constant 1 : index
    %c0_44 = arith.constant 0 : index
    %c0_45 = arith.constant 0 : index
    %c1_46 = arith.constant 1 : index
    %c0_47 = arith.constant 0 : index
    %18 = vector.load %arg1[%c0_42, %c1_43, %c0_44, %c0_45, %c1_46, %c0_47] : memref<1x2x2x9x17x4xbf16, #tpu.memory_space<vmem>>, vector<1x1x1x8x16x4xbf16>
    %19 = vector.shape_cast %18 : vector<1x1x1x8x16x4xbf16> to vector<8x16x4xbf16>
    %c0_48 = arith.constant 0 : index
    %c0_49 = arith.constant 0 : index
    %c0_50 = arith.constant 0 : index
    %c1_51 = arith.constant 1 : index
    %c0_52 = arith.constant 0 : index
    %c0_53 = arith.constant 0 : index
    %20 = vector.load %arg1[%c0_48, %c0_49, %c0_50, %c1_51, %c0_52, %c0_53] : memref<1x2x2x9x17x4xbf16, #tpu.memory_space<vmem>>, vector<1x1x1x8x16x4xbf16>
    %21 = vector.shape_cast %20 : vector<1x1x1x8x16x4xbf16> to vector<8x16x4xbf16>
    %c0_54 = arith.constant 0 : index
    %c0_55 = arith.constant 0 : index
    %c1_56 = arith.constant 1 : index
    %c1_57 = arith.constant 1 : index
    %c0_58 = arith.constant 0 : index
    %c0_59 = arith.constant 0 : index
    %22 = vector.load %arg1[%c0_54, %c0_55, %c1_56, %c1_57, %c0_58, %c0_59] : memref<1x2x2x9x17x4xbf16, #tpu.memory_space<vmem>>, vector<1x1x1x8x16x4xbf16>
    %23 = vector.shape_cast %22 : vector<1x1x1x8x16x4xbf16> to vector<8x16x4xbf16>
    %c0_60 = arith.constant 0 : index
    %c0_61 = arith.constant 0 : index
    %c0_62 = arith.constant 0 : index
    %c1_63 = arith.constant 1 : index
    %c1_64 = arith.constant 1 : index
    %c0_65 = arith.constant 0 : index
    %24 = vector.load %arg1[%c0_60, %c0_61, %c0_62, %c1_63, %c1_64, %c0_65] : memref<1x2x2x9x17x4xbf16, #tpu.memory_space<vmem>>, vector<1x1x1x8x16x4xbf16>
    %25 = vector.shape_cast %24 : vector<1x1x1x8x16x4xbf16> to vector<8x16x4xbf16>
    %26 = tpu.concatenate %9, %11, %13, %15, %17, %19, %21, %23, %25 in 2 : vector<8x16x4xbf16>, vector<8x16x4xbf16>, vector<8x16x4xbf16>, vector<8x16x4xbf16>, vector<8x16x4xbf16>, vector<8x16x4xbf16>, vector<8x16x4xbf16>, vector<8x16x4xbf16>, vector<8x16x4xbf16> -> vector<8x16x36xbf16>
    %27 = vector.shape_cast %26 : vector<8x16x36xbf16> to vector<128x36xbf16>
    %c0_66 = arith.constant 0 : index
    %c0_67 = arith.constant 0 : index
    %28 = vector.load %arg2[%c0_66, %c0_67] : memref<36x8xbf16, #tpu.memory_space<vmem>>, vector<36x8xbf16>
    %cst_68 = arith.constant dense<0.000000e+00> : vector<128x8xf32>
    %29 = tpu.matmul %27, %28, %cst_68 {dimension_numbers = #tpu.dot_dimension_numbers<[1], [0], [0], [1], [0, 0, 1, 1], [], []>} : vector<128x36xbf16>, vector<36x8xbf16>, vector<128x8xf32> -> vector<128x8xf32>
    %c0_69 = arith.constant 0 : index
    %c0_70 = arith.constant 0 : index
    %30 = vector.load %arg3[%c0_69, %c0_70] : memref<1x8xf32, #tpu.memory_space<vmem>>, vector<1x8xf32>
    %31 = vector.shape_cast %30 : vector<1x8xf32> to vector<8xf32>
    %32 = vector.shape_cast %31 : vector<8xf32> to vector<1x8xf32>
    %33 = vector.broadcast %32 : vector<1x8xf32> to vector<128x8xf32>
    %34 = arith.addf %29, %33 : vector<128x8xf32>
    %cst_71 = arith.constant 0.000000e+00 : f32
    %35 = vector.broadcast %cst_71 : f32 to vector<128x8xf32>
    %36 = arith.maximumf %34, %35 : vector<128x8xf32>
    %37 = vector.shape_cast %36 : vector<128x8xf32> to vector<8x16x8xf32>
    %38 = vector.extract_strided_slice %37 {offsets = [0, 0, 0], sizes = [8, 8, 8], strides = [1, 1, 1]} : vector<8x16x8xf32> to vector<8x8x8xf32>
    %39 = arith.truncf %38 : vector<8x8x8xf32> to vector<8x8x8xbf16>
    %c1_72 = arith.constant 1 : index
    %c1_73 = arith.constant 1 : index
    %c0_74 = arith.constant 0 : index
    %40 = vector.load %arg9[%c1_72, %c1_73, %c0_74] : memref<10x18x8xbf16, #tpu.memory_space<vmem>>, vector<8x8x8xbf16>
    tpu.vector_store %arg9[%c1_72, %c1_73, %c0_74], %39 {strides = array<i32>} : memref<10x18x8xbf16, #tpu.memory_space<vmem>>, vector<8x8x8xbf16>,
    %c0_75 = arith.constant 0 : index
    %c0_76 = arith.constant 0 : index
    %c0_77 = arith.constant 0 : index
    %41 = vector.load %arg9[%c0_75, %c0_76, %c0_77] : memref<10x18x8xbf16, #tpu.memory_space<vmem>>, vector<8x16x8xbf16>
    %c0_78 = arith.constant 0 : index
    %c1_79 = arith.constant 1 : index
    %c0_80 = arith.constant 0 : index
    %42 = vector.load %arg9[%c0_78, %c1_79, %c0_80] : memref<10x18x8xbf16, #tpu.memory_space<vmem>>, vector<8x16x8xbf16>
    %c0_81 = arith.constant 0 : index
    %c2 = arith.constant 2 : index
    %c0_82 = arith.constant 0 : index
    %43 = vector.load %arg9[%c0_81, %c2, %c0_82] : memref<10x18x8xbf16, #tpu.memory_space<vmem>>, vector<8x16x8xbf16>
    %c1_83 = arith.constant 1 : index
    %c0_84 = arith.constant 0 : index
    %c0_85 = arith.constant 0 : index
    %44 = vector.load %arg9[%c1_83, %c0_84, %c0_85] : memref<10x18x8xbf16, #tpu.memory_space<vmem>>, vector<8x16x8xbf16>
    %c1_86 = arith.constant 1 : index
    %c1_87 = arith.constant 1 : index
    %c0_88 = arith.constant 0 : index
    %45 = vector.load %arg9[%c1_86, %c1_87, %c0_88] : memref<10x18x8xbf16, #tpu.memory_space<vmem>>, vector<8x16x8xbf16>
    %c1_89 = arith.constant 1 : index
    %c2_90 = arith.constant 2 : index
    %c0_91 = arith.constant 0 : index
    %46 = vector.load %arg9[%c1_89, %c2_90, %c0_91] : memref<10x18x8xbf16, #tpu.memory_space<vmem>>, vector<8x16x8xbf16>
    %c2_92 = arith.constant 2 : index
    %c0_93 = arith.constant 0 : index
    %c0_94 = arith.constant 0 : index
    %47 = vector.load %arg9[%c2_92, %c0_93, %c0_94] : memref<10x18x8xbf16, #tpu.memory_space<vmem>>, vector<8x16x8xbf16>
    %c2_95 = arith.constant 2 : index
    %c1_96 = arith.constant 1 : index
    %c0_97 = arith.constant 0 : index
    %48 = vector.load %arg9[%c2_95, %c1_96, %c0_97] : memref<10x18x8xbf16, #tpu.memory_space<vmem>>, vector<8x16x8xbf16>
    %c2_98 = arith.constant 2 : index
    %c2_99 = arith.constant 2 : index
    %c0_100 = arith.constant 0 : index
    %49 = vector.load %arg9[%c2_98, %c2_99, %c0_100] : memref<10x18x8xbf16, #tpu.memory_space<vmem>>, vector<8x16x8xbf16>
    %50 = tpu.concatenate %41, %42, %43, %44, %45, %46, %47, %48, %49 in 2 : vector<8x16x8xbf16>, vector<8x16x8xbf16>, vector<8x16x8xbf16>, vector<8x16x8xbf16>, vector<8x16x8xbf16>, vector<8x16x8xbf16>, vector<8x16x8xbf16>, vector<8x16x8xbf16>, vector<8x16x8xbf16> -> vector<8x16x72xbf16>
    %51 = vector.shape_cast %50 : vector<8x16x72xbf16> to vector<128x72xbf16>
    %c0_101 = arith.constant 0 : index
    %c0_102 = arith.constant 0 : index
    %52 = vector.load %arg4[%c0_101, %c0_102] : memref<72x8xbf16, #tpu.memory_space<vmem>>, vector<72x8xbf16>
    %cst_103 = arith.constant dense<0.000000e+00> : vector<128x8xf32>
    %53 = tpu.matmul %51, %52, %cst_103 {dimension_numbers = #tpu.dot_dimension_numbers<[1], [0], [0], [1], [0, 0, 1, 1], [], []>} : vector<128x72xbf16>, vector<72x8xbf16>, vector<128x8xf32> -> vector<128x8xf32>
    %c0_104 = arith.constant 0 : index
    %c0_105 = arith.constant 0 : index
    %54 = vector.load %arg5[%c0_104, %c0_105] : memref<1x8xf32, #tpu.memory_space<vmem>>, vector<1x8xf32>
    %55 = vector.shape_cast %54 : vector<1x8xf32> to vector<8xf32>
    %56 = vector.shape_cast %55 : vector<8xf32> to vector<1x8xf32>
    %57 = vector.broadcast %56 : vector<1x8xf32> to vector<128x8xf32>
    %58 = arith.addf %53, %57 : vector<128x8xf32>
    %c0_106 = arith.constant 0 : index
    %c1_107 = arith.constant 1 : index
    %c1_108 = arith.constant 1 : index
    %c0_109 = arith.constant 0 : index
    %c0_110 = arith.constant 0 : index
    %c0_111 = arith.constant 0 : index
    %59 = vector.load %arg1[%c0_106, %c1_107, %c1_108, %c0_109, %c0_110, %c0_111] : memref<1x2x2x9x17x4xbf16, #tpu.memory_space<vmem>>, vector<1x1x1x8x16x4xbf16>
    %60 = vector.shape_cast %59 : vector<1x1x1x8x16x4xbf16> to vector<8x16x4xbf16>
    %61 = vector.shape_cast %60 : vector<8x16x4xbf16> to vector<128x4xbf16>
    %c0_112 = arith.constant 0 : index
    %c0_113 = arith.constant 0 : index
    %62 = vector.load %arg6[%c0_112, %c0_113] : memref<4x8xbf16, #tpu.memory_space<vmem>>, vector<4x8xbf16>
    %cst_114 = arith.constant dense<0.000000e+00> : vector<128x8xf32>
    %63 = tpu.matmul %61, %62, %cst_114 {dimension_numbers = #tpu.dot_dimension_numbers<[1], [0], [0], [1], [0, 0, 1, 1], [], []>} : vector<128x4xbf16>, vector<4x8xbf16>, vector<128x8xf32> -> vector<128x8xf32>
    %c0_115 = arith.constant 0 : index
    %c0_116 = arith.constant 0 : index
    %64 = vector.load %arg7[%c0_115, %c0_116] : memref<1x8xf32, #tpu.memory_space<vmem>>, vector<1x8xf32>
    %65 = vector.shape_cast %64 : vector<1x8xf32> to vector<8xf32>
    %66 = vector.shape_cast %65 : vector<8xf32> to vector<1x8xf32>
    %67 = vector.broadcast %66 : vector<1x8xf32> to vector<128x8xf32>
    %68 = arith.addf %63, %67 : vector<128x8xf32>
    %69 = arith.addf %58, %68 : vector<128x8xf32>
    %cst_117 = arith.constant 0.000000e+00 : f32
    %70 = vector.broadcast %cst_117 : f32 to vector<128x8xf32>
    %71 = arith.maximumf %69, %70 : vector<128x8xf32>
    %72 = vector.shape_cast %71 : vector<128x8xf32> to vector<8x16x8xf32>
    %73 = vector.extract_strided_slice %72 {offsets = [0, 0, 0], sizes = [8, 8, 8], strides = [1, 1, 1]} : vector<8x16x8xf32> to vector<8x8x8xf32>
    %c0_118 = arith.constant 0 : index
    %c0_119 = arith.constant 0 : index
    %c0_120 = arith.constant 0 : index
    %c0_121 = arith.constant 0 : index
    %74 = vector.load %arg8[%c0_118, %c0_119, %c0_120, %c0_121] : memref<1x8x8x8xf32, #tpu.memory_space<vmem>>, vector<1x8x8x8xf32>
    %75 = vector.shape_cast %74 : vector<1x8x8x8xf32> to vector<8x8x8xf32>
    %76 = vector.shape_cast %73 : vector<8x8x8xf32> to vector<1x8x8x8xf32>
    tpu.vector_store %arg8[%c0_118, %c0_119, %c0_120, %c0_121], %76 {strides = array<i32>} : memref<1x8x8x8xf32, #tpu.memory_space<vmem>>, vector<1x8x8x8xf32>,
    return
  }
  func.func @transform_0(%arg0: i32) -> (i32, i32, i32, i32, i32, i32) {
    %c0_i32 = arith.constant 0 : i32
    %c0_i32_0 = arith.constant 0 : i32
    %c0_i32_1 = arith.constant 0 : i32
    %c0_i32_2 = arith.constant 0 : i32
    %c0_i32_3 = arith.constant 0 : i32
    %c0_i32_4 = arith.constant 0 : i32
    return %arg0, %c0_i32, %c0_i32_0, %c0_i32_1, %c0_i32_2, %c0_i32_3 : i32, i32, i32, i32, i32, i32
  }
  func.func @transform_1(%arg0: i32) -> (i32, i32) {
    %c0_i32 = arith.constant 0 : i32
    %c0_i32_0 = arith.constant 0 : i32
    %c0_i32_1 = arith.constant 0 : i32
    return %c0_i32, %c0_i32_0 : i32, i32
  }
  func.func @transform_2(%arg0: i32) -> (i32, i32) {
    %c0_i32 = arith.constant 0 : i32
    %c0_i32_0 = arith.constant 0 : i32
    %c0_i32_1 = arith.constant 0 : i32
    return %c0_i32, %c0_i32_0 : i32, i32
  }
  func.func @transform_3(%arg0: i32) -> (i32, i32) {
    %c0_i32 = arith.constant 0 : i32
    %c0_i32_0 = arith.constant 0 : i32
    %c0_i32_1 = arith.constant 0 : i32
    return %c0_i32, %c0_i32_0 : i32, i32
  }
  func.func @transform_4(%arg0: i32) -> (i32, i32) {
    %c0_i32 = arith.constant 0 : i32
    %c0_i32_0 = arith.constant 0 : i32
    %c0_i32_1 = arith.constant 0 : i32
    return %c0_i32, %c0_i32_0 : i32, i32
  }
  func.func @transform_5(%arg0: i32) -> (i32, i32) {
    %c0_i32 = arith.constant 0 : i32
    %c0_i32_0 = arith.constant 0 : i32
    %c0_i32_1 = arith.constant 0 : i32
    return %c0_i32, %c0_i32_0 : i32, i32
  }
  func.func @transform_6(%arg0: i32) -> (i32, i32) {
    %c0_i32 = arith.constant 0 : i32
    %c0_i32_0 = arith.constant 0 : i32
    %c0_i32_1 = arith.constant 0 : i32
    return %c0_i32, %c0_i32_0 : i32, i32
  }
  func.func @transform_7(%arg0: i32) -> (i32, i32, i32, i32) {
    %c0_i32 = arith.constant 0 : i32
    %c0_i32_0 = arith.constant 0 : i32
    %c0_i32_1 = arith.constant 0 : i32
    %c0_i32_2 = arith.constant 0 : i32
    return %arg0, %c0_i32, %c0_i32_0, %c0_i32_1 : i32, i32, i32, i32
  }
}

</mosaic_0001>

<llo_original>
// kernel: basic_block_forward.1
$region0: #{basic_block_forward.1}
  #allocation0 [shape = 'u32[]', space=smem, size = 0x4, offset = 0x4, fixed_abs, tag = 'smem constant byte address 0x4 - core index']
  #allocation1 [shape = 'u32[144,128]{1,0:T(1,128)}', space=vmem, size = 0x12000, scoped, tag = 'internal scratch']
  #allocation2 [shape = 'bf16[10,18,8]{2,1,0:T(8,128)(2,1)}', space=vmem, size = 0xf000, scoped, tag = 'scratch operand']
  %s0 = inlined_call_operand.vmem [shape: bf16[2,2,2,9,17,4], index: 0, kind: input, shape index: {}]
  %s1 = inlined_call_operand.vmem [shape: bf16[36,8], index: 1, kind: input, shape index: {}]
  %s2 = inlined_call_operand.vmem [shape: f32[1,8], index: 2, kind: input, shape index: {}]
  %s3 = inlined_call_operand.vmem [shape: bf16[72,8], index: 3, kind: input, shape index: {}]
  %s4 = inlined_call_operand.vmem [shape: f32[1,8], index: 4, kind: input, shape index: {}]
  %s5 = inlined_call_operand.vmem [shape: bf16[4,8], index: 5, kind: input, shape index: {}]
  %s6 = inlined_call_operand.vmem [shape: f32[1,8], index: 6, kind: input, shape index: {}]
  %s7 = inlined_call_operand.vmem [shape: f32[2,8,8,8], index: 7, kind: output, shape index: {}]
  %s8 = sld [smem:[#allocation0]]
  $region61: #{basic_block_forward.1} parent=0
    _
  %s10 = ssub.s32 1, %s8
  %s11 = scalar_select 0, %s10, %s8
  loop: start=0, step=1, limit=4
  $region2: #{basic_block_forward.1} parent=0 // loop_pre_header
    _
  $region3: #{basic_block_forward.1} parent=0 // loop_header
    %s13 = sphi 0, %s17
    %p14 = scmp.ge.s32.totalorder %s13, 4
    %s23 = sphi 0, %s25
    %s26 = sphi 0, %s23
    %s27 = sphi 0, %s26
    %s43 = sphi 0, %s27
    %s47 = sphi 0, %s47
    %s49 = sphi 0, %s47
    %s50 = sphi 0, %s49
    %s64 = sphi 0, %s50
    %s68 = sphi 0, %s68
    %s70 = sphi 0, %s68
    %s71 = sphi 0, %s70
    %s85 = sphi 0, %s71
    %s89 = sphi 0, %s89
    %s91 = sphi 0, %s89
    %s92 = sphi 0, %s91
    %s106 = sphi 0, %s92
    %s110 = sphi 0, %s110
    %s112 = sphi 0, %s110
    %s113 = sphi 0, %s112
    %s127 = sphi 0, %s113
    %s131 = sphi 0, %s131
    %s133 = sphi 0, %s131
    %s134 = sphi 0, %s133
    %s148 = sphi 0, %s134
    %s152 = sphi 0, %s152
    %s154 = sphi 0, %s152
    %s155 = sphi 0, %s154
    %s169 = sphi 0, %s155
    %s175 = sphi 0, %s177
    %s178 = sphi 0, %s175
    %s179 = sphi 0, %s178
    %s195 = sphi 0, %s179
  $region4: #{basic_block_forward.1} parent=0 // loop_header_branch
    %16 = sbr.rel (%p14) target = $region8
  $region5: #{basic_block_forward.1} parent=0 // loop_body
    %s18 = ssub.s32 %s13, 1
    %s19 = ssub.s32 %s13, 2
    %s20 = sadd.s32 %s13, 1
    %s21 = ssub.s32 %s13, %s20
    %p22 = scmp.eq.s32.totalorder %s21, 0
    %s24 = sadd.s32 %s23, 1
    %s25 = scalar_select %p22, %s23, %s24
    %p28 = pneg %p22
    %p29 = scmp.eq.s32.totalorder %s13, 1
    %p30 = por %p28, %p29
    %p31 = scmp.ne.s32.totalorder %s23, %s26
    %p32 = scmp.eq.s32.totalorder %s13, 0
    %p33 = por %p31, %p32
    %p34 = scmp.ne.s32.totalorder %s23, %s26
    %p35 = scmp.eq.s32.totalorder %s18, 1
    %p36 = por %p34, %p35
    %p37 = scmp.ne.s32.totalorder %s26, %s27
    %p38 = scmp.eq.s32.totalorder %s18, 0
    %p39 = por %p37, %p38
    %p40 = scmp.ne.s32.totalorder %s26, %s27
    %p41 = scmp.eq.s32.totalorder %s19, 1
    %p42 = por %p40, %p41
    %p44 = scmp.ne.s32.totalorder %s27, %s43
    %p45 = scmp.eq.s32.totalorder %s19, 0
    %p46 = por %p44, %p45
    %s48 = sadd.s32 %s47, 1
    %p51 = scmp.eq.s32.totalorder %s13, 1
    %p52 = scmp.ne.s32.totalorder %s47, %s49
    %p53 = scmp.eq.s32.totalorder %s13, 0
    %p54 = por %p52, %p53
    %p55 = scmp.ne.s32.totalorder %s47, %s49
    %p56 = scmp.eq.s32.totalorder %s18, 1
    %p57 = por %p55, %p56
    %p58 = scmp.ne.s32.totalorder %s49, %s50
    %p59 = scmp.eq.s32.totalorder %s18, 0
    %p60 = por %p58, %p59
    %p61 = scmp.ne.s32.totalorder %s49, %s50
    %p62 = scmp.eq.s32.totalorder %s19, 1
    %p63 = por %p61, %p62
    %p65 = scmp.ne.s32.totalorder %s50, %s64
    %p66 = scmp.eq.s32.totalorder %s19, 0
    %p67 = por %p65, %p66
    %s69 = sadd.s32 %s68, 1
    %p72 = scmp.eq.s32.totalorder %s13, 1
    %p73 = scmp.ne.s32.totalorder %s68, %s70
    %p74 = scmp.eq.s32.totalorder %s13, 0
    %p75 = por %p73, %p74
    %p76 = scmp.ne.s32.totalorder %s68, %s70
    %p77 = scmp.eq.s32.totalorder %s18, 1
    %p78 = por %p76, %p77
    %p79 = scmp.ne.s32.totalorder %s70, %s71
    %p80 = scmp.eq.s32.totalorder %s18, 0
    %p81 = por %p79, %p80
    %p82 = scmp.ne.s32.totalorder %s70, %s71
    %p83 = scmp.eq.s32.totalorder %s19, 1
    %p84 = por %p82, %p83
    %p86 = scmp.ne.s32.totalorder %s71, %s85
    %p87 = scmp.eq.s32.totalorder %s19, 0
    %p88 = por %p86, %p87
    %s90 = sadd.s32 %s89, 1
    %p93 = scmp.eq.s32.totalorder %s13, 1
    %p94 = scmp.ne.s32.totalorder %s89, %s91
    %p95 = scmp.eq.s32.totalorder %s13, 0
    %p96 = por %p94, %p95
    %p97 = scmp.ne.s32.totalorder %s89, %s91
    %p98 = scmp.eq.s32.totalorder %s18, 1
    %p99 = por %p97, %p98
    %p100 = scmp.ne.s32.totalorder %s91, %s92
    %p101 = scmp.eq.s32.totalorder %s18, 0
    %p102 = por %p100, %p101
    %p103 = scmp.ne.s32.totalorder %s91, %s92
    %p104 = scmp.eq.s32.totalorder %s19, 1
    %p105 = por %p103, %p104
    %p107 = scmp.ne.s32.totalorder %s92, %s106
    %p108 = scmp.eq.s32.totalorder %s19, 0
    %p109 = por %p107, %p108
    %s111 = sadd.s32 %s110, 1
    %p114 = scmp.eq.s32.totalorder %s13, 1
    %p115 = scmp.ne.s32.totalorder %s110, %s112
    %p116 = scmp.eq.s32.totalorder %s13, 0
    %p117 = por %p115, %p116
    %p118 = scmp.ne.s32.totalorder %s110, %s112
    %p119 = scmp.eq.s32.totalorder %s18, 1
    %p120 = por %p118, %p119
    %p121 = scmp.ne.s32.totalorder %s112, %s113
    %p122 = scmp.eq.s32.totalorder %s18, 0
    %p123 = por %p121, %p122
    %p124 = scmp.ne.s32.totalorder %s112, %s113
    %p125 = scmp.eq.s32.totalorder %s19, 1
    %p126 = por %p124, %p125
    %p128 = scmp.ne.s32.totalorder %s113, %s127
    %p129 = scmp.eq.s32.totalorder %s19, 0
    %p130 = por %p128, %p129
    %s132 = sadd.s32 %s131, 1
    %p135 = scmp.eq.s32.totalorder %s13, 1
    %p136 = scmp.ne.s32.totalorder %s131, %s133
    %p137 = scmp.eq.s32.totalorder %s13, 0
    %p138 = por %p136, %p137
    %p139 = scmp.ne.s32.totalorder %s131, %s133
    %p140 = scmp.eq.s32.totalorder %s18, 1
    %p141 = por %p139, %p140
    %p142 = scmp.ne.s32.totalorder %s133, %s134
    %p143 = scmp.eq.s32.totalorder %s18, 0
    %p144 = por %p142, %p143
    %p145 = scmp.ne.s32.totalorder %s133, %s134
    %p146 = scmp.eq.s32.totalorder %s19, 1
    %p147 = por %p145, %p146
    %p149 = scmp.ne.s32.totalorder %s134, %s148
    %p150 = scmp.eq.s32.totalorder %s19, 0
    %p151 = por %p149, %p150
    %s153 = sadd.s32 %s152, 1
    %p156 = scmp.eq.s32.totalorder %s13, 1
    %p157 = scmp.ne.s32.totalorder %s152, %s154
    %p158 = scmp.eq.s32.totalorder %s13, 0
    %p159 = por %p157, %p158
    %p160 = scmp.ne.s32.totalorder %s152, %s154
    %p161 = scmp.eq.s32.totalorder %s18, 1
    %p162 = por %p160, %p161
    %p163 = scmp.ne.s32.totalorder %s154, %s155
    %p164 = scmp.eq.s32.totalorder %s18, 0
    %p165 = por %p163, %p164
    %p166 = scmp.ne.s32.totalorder %s154, %s155
    %p167 = scmp.eq.s32.totalorder %s19, 1
    %p168 = por %p166, %p167
    %p170 = scmp.ne.s32.totalorder %s155, %s169
    %p171 = scmp.eq.s32.totalorder %s19, 0
    %p172 = por %p170, %p171
    %s173 = ssub.s32 %s13, %s20
    %p174 = scmp.eq.s32.totalorder %s173, 0
    %s176 = sadd.s32 %s175, 1
    %s177 = scalar_select %p174, %s175, %s176
    %p180 = pneg %p174
    %p181 = scmp.eq.s32.totalorder %s13, 1
    %p182 = por %p180, %p181
    %p183 = scmp.ne.s32.totalorder %s175, %s178
    %p184 = scmp.eq.s32.totalorder %s13, 0
    %p185 = por %p183, %p184
    %p186 = scmp.ne.s32.totalorder %s175, %s178
    %p187 = scmp.eq.s32.totalorder %s18, 1
    %p188 = por %p186, %p187
    %p189 = scmp.ne.s32.totalorder %s178, %s179
    %p190 = scmp.eq.s32.totalorder %s18, 0
    %p191 = por %p189, %p190
    %p192 = scmp.ne.s32.totalorder %s178, %s179
    %p193 = scmp.eq.s32.totalorder %s19, 1
    %p194 = por %p192, %p193
    %p196 = scmp.ne.s32.totalorder %s179, %s195
    %p197 = scmp.eq.s32.totalorder %s19, 0
    %p198 = por %p196, %p197
    %p199 = scmp.le.s32.totalorder 1, %s13
    %p200 = scmp.lt.s32.totalorder %s13, 3
    %p201 = pnand %p199, %p200
    %p202 = pneg %p201
    // Predicated region
    $region9: #{basic_block_forward.1} parent=5 // pred_check
      _
    $region10: #{basic_block_forward.1} parent=5 // pred_check_branch
      %204 = sbr.rel (%p201) target = $region12
    $region11: #{basic_block_forward.1} parent=5 // pred_region
      %s205 = ssub.s32 %s13, 1
      // Predicated region
      $region13: #{basic_block_forward.1} parent=11 // pred_check
        %p206 = pneg %p60
      $region14: #{basic_block_forward.1} parent=11 // pred_check_branch
        %208 = sbr.rel (%p206) target = $region16
      $region15: #{basic_block_forward.1} parent=11 // pred_region
        _
      $region16: #{basic_block_forward.1} parent=11 // pred_fallthru
        _
      // Predicated region
      $region17: #{basic_block_forward.1} parent=11 // pred_check
        %p209 = pneg %p81
      $region18: #{basic_block_forward.1} parent=11 // pred_check_branch
        %211 = sbr.rel (%p209) target = $region20
      $region19: #{basic_block_forward.1} parent=11 // pred_region
        _
      $region20: #{basic_block_forward.1} parent=11 // pred_fallthru
        _
      // Predicated region
      $region21: #{basic_block_forward.1} parent=11 // pred_check
        %p212 = pneg %p102
      $region22: #{basic_block_forward.1} parent=11 // pred_check_branch
        %214 = sbr.rel (%p212) target = $region24
      $region23: #{basic_block_forward.1} parent=11 // pred_region
        _
      $region24: #{basic_block_forward.1} parent=11 // pred_fallthru
        _
      // Predicated region
      $region25: #{basic_block_forward.1} parent=11 // pred_check
        %p215 = pneg %p123
      $region26: #{basic_block_forward.1} parent=11 // pred_check_branch
        %217 = sbr.rel (%p215) target = $region28
      $region27: #{basic_block_forward.1} parent=11 // pred_region
        _
      $region28: #{basic_block_forward.1} parent=11 // pred_fallthru
        _
      // Predicated region
      $region29: #{basic_block_forward.1} parent=11 // pred_check
        %p218 = pneg %p144
      $region30: #{basic_block_forward.1} parent=11 // pred_check_branch
        %220 = sbr.rel (%p218) target = $region32
      $region31: #{basic_block_forward.1} parent=11 // pred_region
        _
      $region32: #{basic_block_forward.1} parent=11 // pred_fallthru
        _
      // Predicated region
      $region33: #{basic_block_forward.1} parent=11 // pred_check
        %p221 = pneg %p165
      $region34: #{basic_block_forward.1} parent=11 // pred_check_branch
        %223 = sbr.rel (%p221) target = $region36
      $region35: #{basic_block_forward.1} parent=11 // pred_region
        _
      $region36: #{basic_block_forward.1} parent=11 // pred_fallthru
        _
    $region12: #{basic_block_forward.1} parent=5 // pred_fallthru
      _
    %p224 = scmp.lt.s32.totalorder %s13, 2
    // Predicated region
    $region37: #{basic_block_forward.1} parent=5 // pred_check
      %p225 = pneg %p224
    $region38: #{basic_block_forward.1} parent=5 // pred_check_branch
      %227 = sbr.rel (%p225) target = $region40
    $region39: #{basic_block_forward.1} parent=5 // pred_region
      // Predicated region
      $region41: #{basic_block_forward.1} parent=39 // pred_check
        %p228 = pneg %p33
      $region42: #{basic_block_forward.1} parent=39 // pred_check_branch
        %230 = sbr.rel (%p228) target = $region44
      $region43: #{basic_block_forward.1} parent=39 // pred_region
        %p231 = scmp.lt.s32.totalorder %s13, 1
        %s232 = scalar_select %p231, %s13, 1
        %s233 = smul.addr %s232, 108
        %s234 = smul.addr %s233, 4
        %s235 = scalar_lea.vmem %s0, %s234
      $region44: #{basic_block_forward.1} parent=39 // pred_fallthru
        _
    $region40: #{basic_block_forward.1} parent=5 // pred_fallthru
      _
    %p236 = scmp.le.s32.totalorder 1, %s13
    %p237 = scmp.lt.s32.totalorder %s13, 3
    %p238 = pnand %p236, %p237
    %p239 = pneg %p238
    // Predicated region
    $region45: #{basic_block_forward.1} parent=5 // pred_check
      _
    $region46: #{basic_block_forward.1} parent=5 // pred_check_branch
      %241 = sbr.rel (%p238) target = $region48
    $region47: #{basic_block_forward.1} parent=5 // pred_region
      %s242 = ssub.s32 %s13, 1
      %p243 = scmp.lt.s32.totalorder %s18, 1
      %s244 = scalar_select %p243, %s18, 1
      %s245 = smul.addr %s244, 108
      %s246 = smul.addr %s245, 4
      %s247 = scalar_lea.vmem %s0, %s246
      %p248 = pneg %p39
      %p249 = pneg %p36
      %p250 = pneg %p60
      %p251 = pneg %p57
      %p252 = pneg %p81
      %p253 = pneg %p78
      %p254 = pneg %p102
      %p255 = pneg %p99
      %p256 = pneg %p123
      %p257 = pneg %p120
      %p258 = pneg %p144
      %p259 = pneg %p141
      %p260 = pneg %p165
      %p261 = pneg %p162
      %p262 = pneg %p191
      %p263 = pneg %p188
      %p264 = scmp.lt.s32.totalorder %s18, 1
      %s265 = scalar_select %p264, %s18, 1
      %s266 = smul.addr %s265, 8
      %s267 = smul.addr %s266, 8
      %s268 = scalar_lea.vmem %s7, %s267
      %p269 = scmp.lt.s32.totalorder %s18, 1
      %s270 = scalar_select %p269, %s18, 1
      %s271 = smul.addr %s270, 108
      %s272 = smul.addr %s271, 4
      %s273 = scalar_lea.vmem %s0, %s272
      %p274 = scmp.lt.s32.totalorder %s18, 1
      %s275 = scalar_select %p274, %s18, 1
      %s276 = smul.addr %s275, 8
      %s277 = smul.addr %s276, 8
      %s278 = scalar_lea.vmem %s7, %s277
      %vm280 = vcmask 60416
      %281 = vst.msk [vmem:[#allocation2] sm:$0xf] %vm280, 0
      %282 = vst.msk [vmem:[#allocation2 + $0x4] sm:$0xf] %vm280, 0
      %vm283 = vcmask 57344
      %284 = vst.msk [vmem:[#allocation2 + $0x8] sm:$0x1] %vm283, 0
      %s285 = scalar_lea.vmem [#allocation2], 108
      %286 = vst.msk [vmem:[%s285] sm:$0xf] %vm280, 0
      %287 = vst.msk [vmem:[%s285 + $0x4] sm:$0xf] %vm280, 0
      %288 = vst.msk [vmem:[%s285 + $0x8] sm:$0x1] %vm283, 0
      %s289 = scalar_lea.vmem [#allocation2], 12
      %vm290 = vcmask 57344
      %vm291 = vsmask.f32 256
      %vm292 = vmand %vm290, %vm291
      %v293 = vld [vmem:[%s289] sm:$0x1]
      %v294 = vsel %vm292, 0, %v293
      %295 = vst [vmem:[%s289] sm:$0x1] %v294
      %v296 = vld [vmem:[%s289 + $0xc] sm:$0x1]
      %v297 = vsel %vm292, 0, %v296
      %298 = vst [vmem:[%s289 + $0xc] sm:$0x1] %v297
      %v299 = vld [vmem:[%s289 + $0x18] sm:$0x1]
      %v300 = vsel %vm292, 0, %v299
      %301 = vst [vmem:[%s289 + $0x18] sm:$0x1] %v300
      %v302 = vld [vmem:[%s289 + $0x24] sm:$0x1]
      %v303 = vsel %vm292, 0, %v302
      %304 = vst [vmem:[%s289 + $0x24] sm:$0x1] %v303
      %v305 = vld [vmem:[%s289 + $0x30] sm:$0x1]
      %v306 = vsel %vm292, 0, %v305
      %307 = vst [vmem:[%s289 + $0x30] sm:$0x1] %v306
      %v308 = vld [vmem:[%s289 + $0x3c] sm:$0x1]
      %v309 = vsel %vm292, 0, %v308
      %310 = vst [vmem:[%s289 + $0x3c] sm:$0x1] %v309
      %v311 = vld [vmem:[%s289 + $0x48] sm:$0x1]
      %v312 = vsel %vm292, 0, %v311
      %313 = vst [vmem:[%s289 + $0x48] sm:$0x1] %v312
      %v314 = vld [vmem:[%s289 + $0x54] sm:$0x1]
      %v315 = vsel %vm292, 0, %v314
      %316 = vst [vmem:[%s289 + $0x54] sm:$0x1] %v315
      %vm317 = vcmask 60416
      %vm318 = vsmask.f32 7938
      %vm319 = vmand %vm317, %vm318
      %v320 = vld [vmem:[%s289 + $0x4] sm:$0xf]
      %v321 = vsel %vm319, 0, %v320
      %322 = vst [vmem:[%s289 + $0x4] sm:$0xf] %v321
      %323 = vst.msk [vmem:[%s289 + $0x8] sm:$0x1] %vm283, 0
      %v324 = vld [vmem:[%s289 + $0x10] sm:$0xf]
      %v325 = vsel %vm319, 0, %v324
      %326 = vst [vmem:[%s289 + $0x10] sm:$0xf] %v325
      %327 = vst.msk [vmem:[%s289 + $0x14] sm:$0x1] %vm283, 0
      %v328 = vld [vmem:[%s289 + $0x1c] sm:$0xf]
      %v329 = vsel %vm319, 0, %v328
      %330 = vst [vmem:[%s289 + $0x1c] sm:$0xf] %v329
      %331 = vst.msk [vmem:[%s289 + $0x20] sm:$0x1] %vm283, 0
      %v332 = vld [vmem:[%s289 + $0x28] sm:$0xf]
      %v333 = vsel %vm319, 0, %v332
      %334 = vst [vmem:[%s289 + $0x28] sm:$0xf] %v333
      %335 = vst.msk [vmem:[%s289 + $0x2c] sm:$0x1] %vm283, 0
      %v336 = vld [vmem:[%s289 + $0x34] sm:$0xf]
      %v337 = vsel %vm319, 0, %v336
      %338 = vst [vmem:[%s289 + $0x34] sm:$0xf] %v337
      %339 = vst.msk [vmem:[%s289 + $0x38] sm:$0x1] %vm283, 0
      %v340 = vld [vmem:[%s289 + $0x40] sm:$0xf]
      %v341 = vsel %vm319, 0, %v340
      %342 = vst [vmem:[%s289 + $0x40] sm:$0xf] %v341
      %343 = vst.msk [vmem:[%s289 + $0x44] sm:$0x1] %vm283, 0
      %v344 = vld [vmem:[%s289 + $0x4c] sm:$0xf]
      %v345 = vsel %vm319, 0, %v344
      %346 = vst [vmem:[%s289 + $0x4c] sm:$0xf] %v345
      %347 = vst.msk [vmem:[%s289 + $0x50] sm:$0x1] %vm283, 0
      %v348 = vld [vmem:[%s289 + $0x58] sm:$0xf]
      %v349 = vsel %vm319, 0, %v348
      %350 = vst [vmem:[%s289 + $0x58] sm:$0xf] %v349
      %351 = vst.msk [vmem:[%s289 + $0x5c] sm:$0x1] %vm283, 0
      %v352 = vld [vmem:[%s273] sm:$0xf]
      %v353 = vld [vmem:[%s273 + $0x4] sm:$0xf]
      %v354 = vld [vmem:[%s273 + $0xc] sm:$0xf]
      %v355 = vld [vmem:[%s273 + $0x10] sm:$0xf]
      %v356 = vld [vmem:[%s273 + $0x18] sm:$0xf]
      %v357 = vld [vmem:[%s273 + $0x1c] sm:$0xf]
      %v358 = vld [vmem:[%s273 + $0x24] sm:$0xf]
      %v359 = vld [vmem:[%s273 + $0x28] sm:$0xf]
      %v360 = vld [vmem:[%s273 + $0x30] sm:$0xf]
      %v361 = vld [vmem:[%s273 + $0x34] sm:$0xf]
      %v362 = vld [vmem:[%s273 + $0x3c] sm:$0xf]
      %v363 = vld [vmem:[%s273 + $0x40] sm:$0xf]
      %v364 = vld [vmem:[%s273 + $0x48] sm:$0xf]
      %v365 = vld [vmem:[%s273 + $0x4c] sm:$0xf]
      %v366 = vld [vmem:[%s273 + $0x54] sm:$0xf]
      %v367 = vld [vmem:[%s273 + $0x58] sm:$0xf]
      %s368 = scalar_lea.vmem %s273, 108
      %v369 = vld [vmem:[%s368] sm:$0xf]
      %v370 = vld [vmem:[%s368 + $0x4] sm:$0xf]
      %v371 = vld [vmem:[%s368 + $0xc] sm:$0xf]
      %v372 = vld [vmem:[%s368 + $0x10] sm:$0xf]
      %v373 = vld [vmem:[%s368 + $0x18] sm:$0xf]
      %v374 = vld [vmem:[%s368 + $0x1c] sm:$0xf]
      %v375 = vld [vmem:[%s368 + $0x24] sm:$0xf]
      %v376 = vld [vmem:[%s368 + $0x28] sm:$0xf]
      %v377 = vld [vmem:[%s368 + $0x30] sm:$0xf]
      %v378 = vld [vmem:[%s368 + $0x34] sm:$0xf]
      %v379 = vld [vmem:[%s368 + $0x3c] sm:$0xf]
      %v380 = vld [vmem:[%s368 + $0x40] sm:$0xf]
      %v381 = vld [vmem:[%s368 + $0x48] sm:$0xf]
      %v382 = vld [vmem:[%s368 + $0x4c] sm:$0xf]
      %v383 = vld [vmem:[%s368 + $0x54] sm:$0xf]
      %v384 = vld [vmem:[%s368 + $0x58] sm:$0xf]
      %v385 = vld [vmem:[%s273 + $0x8] sm:$0x1]
      %v386 = vld [vmem:[%s273 + $0x14] sm:$0x1]
      %v387 = vld [vmem:[%s273 + $0x20] sm:$0x1]
      %v388 = vld [vmem:[%s273 + $0x2c] sm:$0x1]
      %v389 = vld [vmem:[%s273 + $0x38] sm:$0x1]
      %v390 = vld [vmem:[%s273 + $0x44] sm:$0x1]
      %v391 = vld [vmem:[%s273 + $0x50] sm:$0x1]
      %v392 = vld [vmem:[%s273 + $0x5c] sm:$0x1]
      %s393 = scalar_lea.vmem %s273, 216
      %v394 = vld [vmem:[%s393] sm:$0xf]
      %v395 = vld [vmem:[%s393 + $0x4] sm:$0xf]
      %v396 = vld [vmem:[%s393 + $0xc] sm:$0xf]
      %v397 = vld [vmem:[%s393 + $0x10] sm:$0xf]
      %v398 = vld [vmem:[%s393 + $0x18] sm:$0xf]
      %v399 = vld [vmem:[%s393 + $0x1c] sm:$0xf]
      %v400 = vld [vmem:[%s393 + $0x24] sm:$0xf]
      %v401 = vld [vmem:[%s393 + $0x28] sm:$0xf]
      %v402 = vld [vmem:[%s393 + $0x30] sm:$0xf]
      %v403 = vld [vmem:[%s393 + $0x34] sm:$0xf]
      %v404 = vld [vmem:[%s393 + $0x3c] sm:$0xf]
      %v405 = vld [vmem:[%s393 + $0x40] sm:$0xf]
      %v406 = vld [vmem:[%s393 + $0x48] sm:$0xf]
      %v407 = vld [vmem:[%s393 + $0x4c] sm:$0xf]
      %v408 = vld [vmem:[%s393 + $0x54] sm:$0xf]
      %v409 = vld [vmem:[%s393 + $0x58] sm:$0xf]
      %s410 = scalar_lea.vmem %s273, 324
      %v411 = vld [vmem:[%s410] sm:$0xf]
      %v412 = vld [vmem:[%s410 + $0x4] sm:$0xf]
      %v413 = vld [vmem:[%s410 + $0xc] sm:$0xf]
      %v414 = vld [vmem:[%s410 + $0x10] sm:$0xf]
      %v415 = vld [vmem:[%s410 + $0x18] sm:$0xf]
      %v416 = vld [vmem:[%s410 + $0x1c] sm:$0xf]
      %v417 = vld [vmem:[%s410 + $0x24] sm:$0xf]
      %v418 = vld [vmem:[%s410 + $0x28] sm:$0xf]
      %v419 = vld [vmem:[%s410 + $0x30] sm:$0xf]
      %v420 = vld [vmem:[%s410 + $0x34] sm:$0xf]
      %v421 = vld [vmem:[%s410 + $0x3c] sm:$0xf]
      %v422 = vld [vmem:[%s410 + $0x40] sm:$0xf]
      %v423 = vld [vmem:[%s410 + $0x48] sm:$0xf]
      %v424 = vld [vmem:[%s410 + $0x4c] sm:$0xf]
      %v425 = vld [vmem:[%s410 + $0x54] sm:$0xf]
      %v426 = vld [vmem:[%s410 + $0x58] sm:$0xf]
      %v427 = vld [vmem:[%s393 + $0x8] sm:$0x1]
      %v428 = vld [vmem:[%s393 + $0x14] sm:$0x1]
      %v429 = vld [vmem:[%s393 + $0x20] sm:$0x1]
      %v430 = vld [vmem:[%s393 + $0x2c] sm:$0x1]
      %v431 = vld [vmem:[%s393 + $0x38] sm:$0x1]
      %v432 = vld [vmem:[%s393 + $0x44] sm:$0x1]
      %v433 = vld [vmem:[%s393 + $0x50] sm:$0x1]
      %v434 = vld [vmem:[%s393 + $0x5c] sm:$0x1]
      %s435 = scalar_lea.vmem %s273, 12
      %v436 = vld [vmem:[%s435] sm:$0xf]
      %v437 = vld [vmem:[%s435 + $0x4] sm:$0xf]
      %v438 = vld [vmem:[%s435 + $0xc] sm:$0xf]
      %v439 = vld [vmem:[%s435 + $0x10] sm:$0xf]
      %v440 = vld [vmem:[%s435 + $0x18] sm:$0xf]
      %v441 = vld [vmem:[%s435 + $0x1c] sm:$0xf]
      %v442 = vld [vmem:[%s435 + $0x24] sm:$0xf]
      %v443 = vld [vmem:[%s435 + $0x28] sm:$0xf]
      %v444 = vld [vmem:[%s435 + $0x30] sm:$0xf]
      %v445 = vld [vmem:[%s435 + $0x34] sm:$0xf]
      %v446 = vld [vmem:[%s435 + $0x3c] sm:$0xf]
      %v447 = vld [vmem:[%s435 + $0x40] sm:$0xf]
      %v448 = vld [vmem:[%s435 + $0x48] sm:$0xf]
      %v449 = vld [vmem:[%s435 + $0x4c] sm:$0xf]
      %v450 = vld [vmem:[%s435 + $0x54] sm:$0xf]
      %v451 = vld [vmem:[%s435 + $0x58] sm:$0xf]
      %s452 = scalar_lea.vmem %s273, 120
      %v453 = vld [vmem:[%s452] sm:$0xf]
      %v454 = vld [vmem:[%s452 + $0x4] sm:$0xf]
      %v455 = vld [vmem:[%s452 + $0xc] sm:$0xf]
      %v456 = vld [vmem:[%s452 + $0x10] sm:$0xf]
      %v457 = vld [vmem:[%s452 + $0x18] sm:$0xf]
      %v458 = vld [vmem:[%s452 + $0x1c] sm:$0xf]
      %v459 = vld [vmem:[%s452 + $0x24] sm:$0xf]
      %v460 = vld [vmem:[%s452 + $0x28] sm:$0xf]
      %v461 = vld [vmem:[%s452 + $0x30] sm:$0xf]
      %v462 = vld [vmem:[%s452 + $0x34] sm:$0xf]
      %v463 = vld [vmem:[%s452 + $0x3c] sm:$0xf]
      %v464 = vld [vmem:[%s452 + $0x40] sm:$0xf]
      %v465 = vld [vmem:[%s452 + $0x48] sm:$0xf]
      %v466 = vld [vmem:[%s452 + $0x4c] sm:$0xf]
      %v467 = vld [vmem:[%s452 + $0x54] sm:$0xf]
      %v468 = vld [vmem:[%s452 + $0x58] sm:$0xf]
      %v469 = vld [vmem:[%s435 + $0x8] sm:$0x1]
      %v470 = vld [vmem:[%s435 + $0x14] sm:$0x1]
      %v471 = vld [vmem:[%s435 + $0x20] sm:$0x1]
      %v472 = vld [vmem:[%s435 + $0x2c] sm:$0x1]
      %v473 = vld [vmem:[%s435 + $0x38] sm:$0x1]
      %v474 = vld [vmem:[%s435 + $0x44] sm:$0x1]
      %v475 = vld [vmem:[%s435 + $0x50] sm:$0x1]
      %v476 = vld [vmem:[%s435 + $0x5c] sm:$0x1]
      %v493 = vunpack.c.l.b16 %v352
      %v494 = vunpack.c.l.b16 %v353
      %v495 = vunpack.c.l.b16 %v354
      %v496 = vunpack.c.l.b16 %v355
      %v497 = vunpack.c.l.b16 %v356
      %v498 = vunpack.c.l.b16 %v357
      %v499 = vunpack.c.l.b16 %v358
      %v500 = vunpack.c.l.b16 %v359
      %v501 = vunpack.c.l.b16 %v360
      %v502 = vunpack.c.l.b16 %v361
      %v503 = vunpack.c.l.b16 %v362
      %v504 = vunpack.c.l.b16 %v363
      %v505 = vunpack.c.l.b16 %v364
      %v506 = vunpack.c.l.b16 %v365
      %v507 = vunpack.c.l.b16 %v366
      %v508 = vunpack.c.l.b16 %v367
      %v509 = vpack.c.b16 %v494, %v493
      %v510 = vpack.c.b16 %v496, %v495
      %v511 = vpack.c.b16 %v498, %v497
      %v512 = vpack.c.b16 %v500, %v499
      %v513 = vpack.c.b16 %v502, %v501
      %v514 = vpack.c.b16 %v504, %v503
      %v515 = vpack.c.b16 %v506, %v505
      %v516 = vpack.c.b16 %v508, %v507
      %v533 = vunpack.c.l.b16 %v369
      %v534 = vunpack.c.l.b16 %v370
      %v535 = vunpack.c.l.b16 %v371
      %v536 = vunpack.c.l.b16 %v372
      %v537 = vunpack.c.l.b16 %v373
      %v538 = vunpack.c.l.b16 %v374
      %v539 = vunpack.c.l.b16 %v375
      %v540 = vunpack.c.l.b16 %v376
      %v541 = vunpack.c.l.b16 %v377
      %v542 = vunpack.c.l.b16 %v378
      %v543 = vunpack.c.l.b16 %v379
      %v544 = vunpack.c.l.b16 %v380
      %v545 = vunpack.c.l.b16 %v381
      %v546 = vunpack.c.l.b16 %v382
      %v547 = vunpack.c.l.b16 %v383
      %v548 = vunpack.c.l.b16 %v384
      %v549 = vpack.c.b16 %v534, %v533
      %v550 = vpack.c.b16 %v536, %v535
      %v551 = vpack.c.b16 %v538, %v537
      %v552 = vpack.c.b16 %v540, %v539
      %v553 = vpack.c.b16 %v542, %v541
      %v554 = vpack.c.b16 %v544, %v543
      %v555 = vpack.c.b16 %v546, %v545
      %v556 = vpack.c.b16 %v548, %v547
      %557 = vrot.lane.b32.xlu0 %v549, 4
      %v558 = vpop.permute.xlu0 %557
      %559 = vrot.lane.b32.xlu0 %v550, 4
      %v560 = vpop.permute.xlu0 %559
      %561 = vrot.lane.b32.xlu0 %v551, 4
      %v562 = vpop.permute.xlu0 %561
      %563 = vrot.lane.b32.xlu0 %v552, 4
      %v564 = vpop.permute.xlu0 %563
      %565 = vrot.lane.b32.xlu0 %v553, 4
      %v566 = vpop.permute.xlu0 %565
      %567 = vrot.lane.b32.xlu0 %v554, 4
      %v568 = vpop.permute.xlu0 %567
      %569 = vrot.lane.b32.xlu0 %v555, 4
      %v570 = vpop.permute.xlu0 %569
      %571 = vrot.lane.b32.xlu0 %v556, 4
      %v572 = vpop.permute.xlu0 %571
      %v581 = vunpack.c.l.b16 %v385
      %v582 = vunpack.c.l.b16 %v386
      %v583 = vunpack.c.l.b16 %v387
      %v584 = vunpack.c.l.b16 %v388
      %v585 = vunpack.c.l.b16 %v389
      %v586 = vunpack.c.l.b16 %v390
      %v587 = vunpack.c.l.b16 %v391
      %v588 = vunpack.c.l.b16 %v392
      %v589 = vpack.c.b16 %v581, %v581
      %v590 = vpack.c.b16 %v582, %v582
      %v591 = vpack.c.b16 %v583, %v583
      %v592 = vpack.c.b16 %v584, %v584
      %v593 = vpack.c.b16 %v585, %v585
      %v594 = vpack.c.b16 %v586, %v586
      %v595 = vpack.c.b16 %v587, %v587
      %v596 = vpack.c.b16 %v588, %v588
      %vm597 = vsmask.f32 7424
      %v599 = vshrl.u32 %v509, 16
      %v601 = vshll.u32 %v509, 16
      %v603 = vrot.slane %v601, 1
      %v604 = vor.u32 %v599, %v603
      %v606 = vshll.u32 %v589, 16
      %v608 = vrot.slane %v606, 1
      %v609 = vsel %vm597, %v604, %v608
      %v611 = vshrl.u32 %v510, 16
      %v613 = vshll.u32 %v510, 16
      %v615 = vrot.slane %v613, 1
      %v616 = vor.u32 %v611, %v615
      %v618 = vshll.u32 %v590, 16
      %v620 = vrot.slane %v618, 1
      %v621 = vsel %vm597, %v616, %v620
      %v623 = vshrl.u32 %v511, 16
      %v625 = vshll.u32 %v511, 16
      %v627 = vrot.slane %v625, 1
      %v628 = vor.u32 %v623, %v627
      %v630 = vshll.u32 %v591, 16
      %v632 = vrot.slane %v630, 1
      %v633 = vsel %vm597, %v628, %v632
      %v635 = vshrl.u32 %v512, 16
      %v637 = vshll.u32 %v512, 16
      %v639 = vrot.slane %v637, 1
      %v640 = vor.u32 %v635, %v639
      %v642 = vshll.u32 %v592, 16
      %v644 = vrot.slane %v642, 1
      %v645 = vsel %vm597, %v640, %v644
      %v647 = vshrl.u32 %v513, 16
      %v649 = vshll.u32 %v513, 16
      %v651 = vrot.slane %v649, 1
      %v652 = vor.u32 %v647, %v651
      %v654 = vshll.u32 %v593, 16
      %v656 = vrot.slane %v654, 1
      %v657 = vsel %vm597, %v652, %v656
      %v659 = vshrl.u32 %v514, 16
      %v661 = vshll.u32 %v514, 16
      %v663 = vrot.slane %v661, 1
      %v664 = vor.u32 %v659, %v663
      %v666 = vshll.u32 %v594, 16
      %v668 = vrot.slane %v666, 1
      %v669 = vsel %vm597, %v664, %v668
      %v671 = vshrl.u32 %v515, 16
      %v673 = vshll.u32 %v515, 16
      %v675 = vrot.slane %v673, 1
      %v676 = vor.u32 %v671, %v675
      %v678 = vshll.u32 %v595, 16
      %v680 = vrot.slane %v678, 1
      %v681 = vsel %vm597, %v676, %v680
      %v683 = vshrl.u32 %v516, 16
      %v685 = vshll.u32 %v516, 16
      %v687 = vrot.slane %v685, 1
      %v688 = vor.u32 %v683, %v687
      %v690 = vshll.u32 %v596, 16
      %v692 = vrot.slane %v690, 1
      %v693 = vsel %vm597, %v688, %v692
      %694 = vrot.lane.b32.xlu0 %v609, 8
      %v695 = vpop.permute.xlu0 %694
      %696 = vrot.lane.b32.xlu0 %v621, 8
      %v697 = vpop.permute.xlu0 %696
      %698 = vrot.lane.b32.xlu0 %v633, 8
      %v699 = vpop.permute.xlu0 %698
      %700 = vrot.lane.b32.xlu0 %v645, 8
      %v701 = vpop.permute.xlu0 %700
      %702 = vrot.lane.b32.xlu0 %v657, 8
      %v703 = vpop.permute.xlu0 %702
      %704 = vrot.lane.b32.xlu0 %v669, 8
      %v705 = vpop.permute.xlu0 %704
      %706 = vrot.lane.b32.xlu0 %v681, 8
      %v707 = vpop.permute.xlu0 %706
      %708 = vrot.lane.b32.xlu0 %v693, 8
      %v709 = vpop.permute.xlu0 %708
      %v726 = vunpack.c.l.b16 %v394
      %v727 = vunpack.c.l.b16 %v395
      %v728 = vunpack.c.l.b16 %v396
      %v729 = vunpack.c.l.b16 %v397
      %v730 = vunpack.c.l.b16 %v398
      %v731 = vunpack.c.l.b16 %v399
      %v732 = vunpack.c.l.b16 %v400
      %v733 = vunpack.c.l.b16 %v401
      %v734 = vunpack.c.l.b16 %v402
      %v735 = vunpack.c.l.b16 %v403
      %v736 = vunpack.c.l.b16 %v404
      %v737 = vunpack.c.l.b16 %v405
      %v738 = vunpack.c.l.b16 %v406
      %v739 = vunpack.c.l.b16 %v407
      %v740 = vunpack.c.l.b16 %v408
      %v741 = vunpack.c.l.b16 %v409
      %v742 = vpack.c.b16 %v727, %v726
      %v743 = vpack.c.b16 %v729, %v728
      %v744 = vpack.c.b16 %v731, %v730
      %v745 = vpack.c.b16 %v733, %v732
      %v746 = vpack.c.b16 %v735, %v734
      %v747 = vpack.c.b16 %v737, %v736
      %v748 = vpack.c.b16 %v739, %v738
      %v749 = vpack.c.b16 %v741, %v740
      %750 = vrot.lane.b32.xlu0 %v742, 12
      %v751 = vpop.permute.xlu0 %750
      %752 = vrot.lane.b32.xlu0 %v743, 12
      %v753 = vpop.permute.xlu0 %752
      %754 = vrot.lane.b32.xlu0 %v744, 12
      %v755 = vpop.permute.xlu0 %754
      %756 = vrot.lane.b32.xlu0 %v745, 12
      %v757 = vpop.permute.xlu0 %756
      %758 = vrot.lane.b32.xlu0 %v746, 12
      %v759 = vpop.permute.xlu0 %758
      %760 = vrot.lane.b32.xlu0 %v747, 12
      %v761 = vpop.permute.xlu0 %760
      %762 = vrot.lane.b32.xlu0 %v748, 12
      %v763 = vpop.permute.xlu0 %762
      %764 = vrot.lane.b32.xlu0 %v749, 12
      %v765 = vpop.permute.xlu0 %764
      %v782 = vunpack.c.l.b16 %v411
      %v783 = vunpack.c.l.b16 %v412
      %v784 = vunpack.c.l.b16 %v413
      %v785 = vunpack.c.l.b16 %v414
      %v786 = vunpack.c.l.b16 %v415
      %v787 = vunpack.c.l.b16 %v416
      %v788 = vunpack.c.l.b16 %v417
      %v789 = vunpack.c.l.b16 %v418
      %v790 = vunpack.c.l.b16 %v419
      %v791 = vunpack.c.l.b16 %v420
      %v792 = vunpack.c.l.b16 %v421
      %v793 = vunpack.c.l.b16 %v422
      %v794 = vunpack.c.l.b16 %v423
      %v795 = vunpack.c.l.b16 %v424
      %v796 = vunpack.c.l.b16 %v425
      %v797 = vunpack.c.l.b16 %v426
      %v798 = vpack.c.b16 %v783, %v782
      %v799 = vpack.c.b16 %v785, %v784
      %v800 = vpack.c.b16 %v787, %v786
      %v801 = vpack.c.b16 %v789, %v788
      %v802 = vpack.c.b16 %v791, %v790
      %v803 = vpack.c.b16 %v793, %v792
      %v804 = vpack.c.b16 %v795, %v794
      %v805 = vpack.c.b16 %v797, %v796
      %806 = vrot.lane.b32.xlu0 %v798, 16
      %v807 = vpop.permute.xlu0 %806
      %808 = vrot.lane.b32.xlu0 %v799, 16
      %v809 = vpop.permute.xlu0 %808
      %810 = vrot.lane.b32.xlu0 %v800, 16
      %v811 = vpop.permute.xlu0 %810
      %812 = vrot.lane.b32.xlu0 %v801, 16
      %v813 = vpop.permute.xlu0 %812
      %814 = vrot.lane.b32.xlu0 %v802, 16
      %v815 = vpop.permute.xlu0 %814
      %816 = vrot.lane.b32.xlu0 %v803, 16
      %v817 = vpop.permute.xlu0 %816
      %818 = vrot.lane.b32.xlu0 %v804, 16
      %v819 = vpop.permute.xlu0 %818
      %820 = vrot.lane.b32.xlu0 %v805, 16
      %v821 = vpop.permute.xlu0 %820
      %v830 = vunpack.c.l.b16 %v427
      %v831 = vunpack.c.l.b16 %v428
      %v832 = vunpack.c.l.b16 %v429
      %v833 = vunpack.c.l.b16 %v430
      %v834 = vunpack.c.l.b16 %v431
      %v835 = vunpack.c.l.b16 %v432
      %v836 = vunpack.c.l.b16 %v433
      %v837 = vunpack.c.l.b16 %v434
      %v838 = vpack.c.b16 %v830, %v830
      %v839 = vpack.c.b16 %v831, %v831
      %v840 = vpack.c.b16 %v832, %v832
      %v841 = vpack.c.b16 %v833, %v833
      %v842 = vpack.c.b16 %v834, %v834
      %v843 = vpack.c.b16 %v835, %v835
      %v844 = vpack.c.b16 %v836, %v836
      %v845 = vpack.c.b16 %v837, %v837
      %v847 = vshrl.u32 %v742, 16
      %v849 = vshll.u32 %v742, 16
      %v851 = vrot.slane %v849, 1
      %v852 = vor.u32 %v847, %v851
      %v854 = vshll.u32 %v838, 16
      %v856 = vrot.slane %v854, 1
      %v857 = vsel %vm597, %v852, %v856
      %v859 = vshrl.u32 %v743, 16
      %v861 = vshll.u32 %v743, 16
      %v863 = vrot.slane %v861, 1
      %v864 = vor.u32 %v859, %v863
      %v866 = vshll.u32 %v839, 16
      %v868 = vrot.slane %v866, 1
      %v869 = vsel %vm597, %v864, %v868
      %v871 = vshrl.u32 %v744, 16
      %v873 = vshll.u32 %v744, 16
      %v875 = vrot.slane %v873, 1
      %v876 = vor.u32 %v871, %v875
      %v878 = vshll.u32 %v840, 16
      %v880 = vrot.slane %v878, 1
      %v881 = vsel %vm597, %v876, %v880
      %v883 = vshrl.u32 %v745, 16
      %v885 = vshll.u32 %v745, 16
      %v887 = vrot.slane %v885, 1
      %v888 = vor.u32 %v883, %v887
      %v890 = vshll.u32 %v841, 16
      %v892 = vrot.slane %v890, 1
      %v893 = vsel %vm597, %v888, %v892
      %v895 = vshrl.u32 %v746, 16
      %v897 = vshll.u32 %v746, 16
      %v899 = vrot.slane %v897, 1
      %v900 = vor.u32 %v895, %v899
      %v902 = vshll.u32 %v842, 16
      %v904 = vrot.slane %v902, 1
      %v905 = vsel %vm597, %v900, %v904
      %v907 = vshrl.u32 %v747, 16
      %v909 = vshll.u32 %v747, 16
      %v911 = vrot.slane %v909, 1
      %v912 = vor.u32 %v907, %v911
      %v914 = vshll.u32 %v843, 16
      %v916 = vrot.slane %v914, 1
      %v917 = vsel %vm597, %v912, %v916
      %v919 = vshrl.u32 %v748, 16
      %v921 = vshll.u32 %v748, 16
      %v923 = vrot.slane %v921, 1
      %v924 = vor.u32 %v919, %v923
      %v926 = vshll.u32 %v844, 16
      %v928 = vrot.slane %v926, 1
      %v929 = vsel %vm597, %v924, %v928
      %v931 = vshrl.u32 %v749, 16
      %v933 = vshll.u32 %v749, 16
      %v935 = vrot.slane %v933, 1
      %v936 = vor.u32 %v931, %v935
      %v938 = vshll.u32 %v845, 16
      %v940 = vrot.slane %v938, 1
      %v941 = vsel %vm597, %v936, %v940
      %942 = vrot.lane.b32.xlu0 %v857, 20
      %v943 = vpop.permute.xlu0 %942
      %944 = vrot.lane.b32.xlu0 %v869, 20
      %v945 = vpop.permute.xlu0 %944
      %946 = vrot.lane.b32.xlu0 %v881, 20
      %v947 = vpop.permute.xlu0 %946
      %948 = vrot.lane.b32.xlu0 %v893, 20
      %v949 = vpop.permute.xlu0 %948
      %950 = vrot.lane.b32.xlu0 %v905, 20
      %v951 = vpop.permute.xlu0 %950
      %952 = vrot.lane.b32.xlu0 %v917, 20
      %v953 = vpop.permute.xlu0 %952
      %954 = vrot.lane.b32.xlu0 %v929, 20
      %v955 = vpop.permute.xlu0 %954
      %956 = vrot.lane.b32.xlu0 %v941, 20
      %v957 = vpop.permute.xlu0 %956
      %v974 = vunpack.c.l.b16 %v436
      %v975 = vunpack.c.l.b16 %v437
      %v976 = vunpack.c.l.b16 %v438
      %v977 = vunpack.c.l.b16 %v439
      %v978 = vunpack.c.l.b16 %v440
      %v979 = vunpack.c.l.b16 %v441
      %v980 = vunpack.c.l.b16 %v442
      %v981 = vunpack.c.l.b16 %v443
      %v982 = vunpack.c.l.b16 %v444
      %v983 = vunpack.c.l.b16 %v445
      %v984 = vunpack.c.l.b16 %v446
      %v985 = vunpack.c.l.b16 %v447
      %v986 = vunpack.c.l.b16 %v448
      %v987 = vunpack.c.l.b16 %v449
      %v988 = vunpack.c.l.b16 %v450
      %v989 = vunpack.c.l.b16 %v451
      %v990 = vpack.c.b16 %v975, %v974
      %v991 = vpack.c.b16 %v977, %v976
      %v992 = vpack.c.b16 %v979, %v978
      %v993 = vpack.c.b16 %v981, %v980
      %v994 = vpack.c.b16 %v983, %v982
      %v995 = vpack.c.b16 %v985, %v984
      %v996 = vpack.c.b16 %v987, %v986
      %v997 = vpack.c.b16 %v989, %v988
      %998 = vrot.lane.b32.xlu0 %v990, 24
      %v999 = vpop.permute.xlu0 %998
      %1000 = vrot.lane.b32.xlu0 %v991, 24
      %v1001 = vpop.permute.xlu0 %1000
      %1002 = vrot.lane.b32.xlu0 %v992, 24
      %v1003 = vpop.permute.xlu0 %1002
      %1004 = vrot.lane.b32.xlu0 %v993, 24
      %v1005 = vpop.permute.xlu0 %1004
      %1006 = vrot.lane.b32.xlu0 %v994, 24
      %v1007 = vpop.permute.xlu0 %1006
      %1008 = vrot.lane.b32.xlu0 %v995, 24
      %v1009 = vpop.permute.xlu0 %1008
      %1010 = vrot.lane.b32.xlu0 %v996, 24
      %v1011 = vpop.permute.xlu0 %1010
      %1012 = vrot.lane.b32.xlu0 %v997, 24
      %v1013 = vpop.permute.xlu0 %1012
      %v1030 = vunpack.c.l.b16 %v453
      %v1031 = vunpack.c.l.b16 %v454
      %v1032 = vunpack.c.l.b16 %v455
      %v1033 = vunpack.c.l.b16 %v456
      %v1034 = vunpack.c.l.b16 %v457
      %v1035 = vunpack.c.l.b16 %v458
      %v1036 = vunpack.c.l.b16 %v459
      %v1037 = vunpack.c.l.b16 %v460
      %v1038 = vunpack.c.l.b16 %v461
      %v1039 = vunpack.c.l.b16 %v462
      %v1040 = vunpack.c.l.b16 %v463
      %v1041 = vunpack.c.l.b16 %v464
      %v1042 = vunpack.c.l.b16 %v465
      %v1043 = vunpack.c.l.b16 %v466
      %v1044 = vunpack.c.l.b16 %v467
      %v1045 = vunpack.c.l.b16 %v468
      %v1046 = vpack.c.b16 %v1031, %v1030
      %v1047 = vpack.c.b16 %v1033, %v1032
      %v1048 = vpack.c.b16 %v1035, %v1034
      %v1049 = vpack.c.b16 %v1037, %v1036
      %v1050 = vpack.c.b16 %v1039, %v1038
      %v1051 = vpack.c.b16 %v1041, %v1040
      %v1052 = vpack.c.b16 %v1043, %v1042
      %v1053 = vpack.c.b16 %v1045, %v1044
      %1054 = vrot.lane.b32.xlu0 %v1046, 28
      %v1055 = vpop.permute.xlu0 %1054
      %1056 = vrot.lane.b32.xlu0 %v1047, 28
      %v1057 = vpop.permute.xlu0 %1056
      %1058 = vrot.lane.b32.xlu0 %v1048, 28
      %v1059 = vpop.permute.xlu0 %1058
      %1060 = vrot.lane.b32.xlu0 %v1049, 28
      %v1061 = vpop.permute.xlu0 %1060
      %1062 = vrot.lane.b32.xlu0 %v1050, 28
      %v1063 = vpop.permute.xlu0 %1062
      %1064 = vrot.lane.b32.xlu0 %v1051, 28
      %v1065 = vpop.permute.xlu0 %1064
      %1066 = vrot.lane.b32.xlu0 %v1052, 28
      %v1067 = vpop.permute.xlu0 %1066
      %1068 = vrot.lane.b32.xlu0 %v1053, 28
      %v1069 = vpop.permute.xlu0 %1068
      %v1078 = vunpack.c.l.b16 %v469
      %v1079 = vunpack.c.l.b16 %v470
      %v1080 = vunpack.c.l.b16 %v471
      %v1081 = vunpack.c.l.b16 %v472
      %v1082 = vunpack.c.l.b16 %v473
      %v1083 = vunpack.c.l.b16 %v474
      %v1084 = vunpack.c.l.b16 %v475
      %v1085 = vunpack.c.l.b16 %v476
      %v1086 = vpack.c.b16 %v1078, %v1078
      %v1087 = vpack.c.b16 %v1079, %v1079
      %v1088 = vpack.c.b16 %v1080, %v1080
      %v1089 = vpack.c.b16 %v1081, %v1081
      %v1090 = vpack.c.b16 %v1082, %v1082
      %v1091 = vpack.c.b16 %v1083, %v1083
      %v1092 = vpack.c.b16 %v1084, %v1084
      %v1093 = vpack.c.b16 %v1085, %v1085
      %v1095 = vshrl.u32 %v990, 16
      %v1097 = vshll.u32 %v990, 16
      %v1099 = vrot.slane %v1097, 1
      %v1100 = vor.u32 %v1095, %v1099
      %v1102 = vshll.u32 %v1086, 16
      %v1104 = vrot.slane %v1102, 1
      %v1105 = vsel %vm597, %v1100, %v1104
      %v1107 = vshrl.u32 %v991, 16
      %v1109 = vshll.u32 %v991, 16
      %v1111 = vrot.slane %v1109, 1
      %v1112 = vor.u32 %v1107, %v1111
      %v1114 = vshll.u32 %v1087, 16
      %v1116 = vrot.slane %v1114, 1
      %v1117 = vsel %vm597, %v1112, %v1116
      %v1119 = vshrl.u32 %v992, 16
      %v1121 = vshll.u32 %v992, 16
      %v1123 = vrot.slane %v1121, 1
      %v1124 = vor.u32 %v1119, %v1123
      %v1126 = vshll.u32 %v1088, 16
      %v1128 = vrot.slane %v1126, 1
      %v1129 = vsel %vm597, %v1124, %v1128
      %v1131 = vshrl.u32 %v993, 16
      %v1133 = vshll.u32 %v993, 16
      %v1135 = vrot.slane %v1133, 1
      %v1136 = vor.u32 %v1131, %v1135
      %v1138 = vshll.u32 %v1089, 16
      %v1140 = vrot.slane %v1138, 1
      %v1141 = vsel %vm597, %v1136, %v1140
      %v1143 = vshrl.u32 %v994, 16
      %v1145 = vshll.u32 %v994, 16
      %v1147 = vrot.slane %v1145, 1
      %v1148 = vor.u32 %v1143, %v1147
      %v1150 = vshll.u32 %v1090, 16
      %v1152 = vrot.slane %v1150, 1
      %v1153 = vsel %vm597, %v1148, %v1152
      %v1155 = vshrl.u32 %v995, 16
      %v1157 = vshll.u32 %v995, 16
      %v1159 = vrot.slane %v1157, 1
      %v1160 = vor.u32 %v1155, %v1159
      %v1162 = vshll.u32 %v1091, 16
      %v1164 = vrot.slane %v1162, 1
      %v1165 = vsel %vm597, %v1160, %v1164
      %v1167 = vshrl.u32 %v996, 16
      %v1169 = vshll.u32 %v996, 16
      %v1171 = vrot.slane %v1169, 1
      %v1172 = vor.u32 %v1167, %v1171
      %v1174 = vshll.u32 %v1092, 16
      %v1176 = vrot.slane %v1174, 1
      %v1177 = vsel %vm597, %v1172, %v1176
      %v1179 = vshrl.u32 %v997, 16
      %v1181 = vshll.u32 %v997, 16
      %v1183 = vrot.slane %v1181, 1
      %v1184 = vor.u32 %v1179, %v1183
      %v1186 = vshll.u32 %v1093, 16
      %v1188 = vrot.slane %v1186, 1
      %v1189 = vsel %vm597, %v1184, %v1188
      %1190 = vrot.lane.b32.xlu0 %v1105, 32
      %v1191 = vpop.permute.xlu0 %1190
      %1192 = vrot.lane.b32.xlu0 %v1117, 32
      %v1193 = vpop.permute.xlu0 %1192
      %1194 = vrot.lane.b32.xlu0 %v1129, 32
      %v1195 = vpop.permute.xlu0 %1194
      %1196 = vrot.lane.b32.xlu0 %v1141, 32
      %v1197 = vpop.permute.xlu0 %1196
      %1198 = vrot.lane.b32.xlu0 %v1153, 32
      %v1199 = vpop.permute.xlu0 %1198
      %1200 = vrot.lane.b32.xlu0 %v1165, 32
      %v1201 = vpop.permute.xlu0 %1200
      %1202 = vrot.lane.b32.xlu0 %v1177, 32
      %v1203 = vpop.permute.xlu0 %1202
      %1204 = vrot.lane.b32.xlu0 %v1189, 32
      %v1205 = vpop.permute.xlu0 %1204
      %vm1206 = vcmask 31744
      %v1208 = vsel %vm1206, %v509, %v558
      %v1210 = vsel %vm1206, %v510, %v560
      %v1212 = vsel %vm1206, %v511, %v562
      %v1214 = vsel %vm1206, %v512, %v564
      %v1216 = vsel %vm1206, %v513, %v566
      %v1218 = vsel %vm1206, %v514, %v568
      %v1220 = vsel %vm1206, %v515, %v570
      %v1222 = vsel %vm1206, %v516, %v572
      %vm1223 = vcmask 64512
      %v1225 = vsel %vm1223, %v1208, %v695
      %v1227 = vsel %vm1223, %v1210, %v697
      %v1229 = vsel %vm1223, %v1212, %v699
      %v1231 = vsel %vm1223, %v1214, %v701
      %v1233 = vsel %vm1223, %v1216, %v703
      %v1235 = vsel %vm1223, %v1218, %v705
      %v1237 = vsel %vm1223, %v1220, %v707
      %v1239 = vsel %vm1223, %v1222, %v709
      %vm1240 = vcmask 97280
      %v1242 = vsel %vm1240, %v1225, %v751
      %v1244 = vsel %vm1240, %v1227, %v753
      %v1246 = vsel %vm1240, %v1229, %v755
      %v1248 = vsel %vm1240, %v1231, %v757
      %v1250 = vsel %vm1240, %v1233, %v759
      %v1252 = vsel %vm1240, %v1235, %v761
      %v1254 = vsel %vm1240, %v1237, %v763
      %v1256 = vsel %vm1240, %v1239, %v765
      %vm1257 = vcmask 130048
      %v1259 = vsel %vm1257, %v1242, %v807
      %v1261 = vsel %vm1257, %v1244, %v809
      %v1263 = vsel %vm1257, %v1246, %v811
      %v1265 = vsel %vm1257, %v1248, %v813
      %v1267 = vsel %vm1257, %v1250, %v815
      %v1269 = vsel %vm1257, %v1252, %v817
      %v1271 = vsel %vm1257, %v1254, %v819
      %v1273 = vsel %vm1257, %v1256, %v821
      %vm1274 = vcmask 162816
      %v1276 = vsel %vm1274, %v1259, %v943
      %v1278 = vsel %vm1274, %v1261, %v945
      %v1280 = vsel %vm1274, %v1263, %v947
      %v1282 = vsel %vm1274, %v1265, %v949
      %v1284 = vsel %vm1274, %v1267, %v951
      %v1286 = vsel %vm1274, %v1269, %v953
      %v1288 = vsel %vm1274, %v1271, %v955
      %v1290 = vsel %vm1274, %v1273, %v957
      %vm1291 = vcmask 195584
      %v1293 = vsel %vm1291, %v1276, %v999
      %v1295 = vsel %vm1291, %v1278, %v1001
      %v1297 = vsel %vm1291, %v1280, %v1003
      %v1299 = vsel %vm1291, %v1282, %v1005
      %v1301 = vsel %vm1291, %v1284, %v1007
      %v1303 = vsel %vm1291, %v1286, %v1009
      %v1305 = vsel %vm1291, %v1288, %v1011
      %v1307 = vsel %vm1291, %v1290, %v1013
      %vm1308 = vcmask 228352
      %v1310 = vsel %vm1308, %v1293, %v1055
      %v1312 = vsel %vm1308, %v1295, %v1057
      %v1314 = vsel %vm1308, %v1297, %v1059
      %v1316 = vsel %vm1308, %v1299, %v1061
      %v1318 = vsel %vm1308, %v1301, %v1063
      %v1320 = vsel %vm1308, %v1303, %v1065
      %v1322 = vsel %vm1308, %v1305, %v1067
      %v1324 = vsel %vm1308, %v1307, %v1069
      %vm1325 = vcmask 261120
      %v1327 = vsel %vm1325, %v1310, %v1191
      %v1329 = vsel %vm1325, %v1312, %v1193
      %v1331 = vsel %vm1325, %v1314, %v1195
      %v1333 = vsel %vm1325, %v1316, %v1197
      %v1335 = vsel %vm1325, %v1318, %v1199
      %v1337 = vsel %vm1325, %v1320, %v1201
      %v1339 = vsel %vm1325, %v1322, %v1203
      %v1341 = vsel %vm1325, %v1324, %v1205
      %v1342 = vld [vmem:[%s1] sm:$0xf]
      %v1343 = vld [vmem:[%s1 + $0x4] sm:$0xf]
      %v1344 = vld [vmem:[%s1 + $0x8] sm:$0xf]
      %v1345 = vld [vmem:[%s1 + $0xc] sm:$0xf]
      %v1346 = vld [vmem:[%s1 + $0x10] sm:$0x3]
      %v1347 = vld [vmem:[%s2] sm:$0x1]
      %v1349 = vlaneseq
      %v1350 = vshrl.u32 %v1349, 7
      %v1351 = vsub.s32 0, %v1350
      %v1352 = vrot.slane %v1347, %v1351
      %v1359 = vunpack.c.l.b16 %v1342
      %v1360 = vunpack.c.l.b16 %v1343
      %v1361 = vunpack.c.l.b16 %v1344
      %v1362 = vunpack.c.l.b16 %v1345
      %v1363 = vunpack.c.l.b16 %v1346
      %v1364 = vpack.c.b16 %v1360, %v1359
      %v1365 = vpack.c.b16 %v1362, %v1361
      %v1366 = vpack.c.b16 %v1363, %v1363
      %vm1369 = vcmask 293888
      %v1370 = vsel %vm1369, %v1327, 0
      %v1372 = vsel %vm1369, %v1329, 0
      %v1374 = vsel %vm1369, %v1331, 0
      %v1376 = vsel %vm1369, %v1333, 0
      %v1378 = vsel %vm1369, %v1335, 0
      %v1380 = vsel %vm1369, %v1337, 0
      %v1382 = vsel %vm1369, %v1339, 0
      %v1384 = vsel %vm1369, %v1341, 0
      %vm1386 = vcmask 1041408
      %v1388 = vsel %vm1386, %v1366, 0
      %1390 = vmatprep.subr.bf16.mxu0 0
      %1391 = vmatpush1.bf16.msra.mxu0 %v1364
      %1392 = vmatprep.subr.bf16.mxu0 0
      %1393 = vmatpush1.bf16.msra.mxu0 %v1365
      %1394 = vmatprep.subr.bf16.mxu0 0
      %1395 = vmatpush1.bf16.msra.mxu0 %v1388
      %1396 = vmatprep.subr.bf16.mxu0 0
      %1397 = vmatpush1.bf16.msra.mxu0 0
      %1398 = vmatprep.subr.bf16.mxu0 0
      %1399 = vmatpush1.bf16.msra.mxu0 0
      %1400 = vmatprep.subr.bf16.mxu0 0
      %1401 = vmatpush1.bf16.msra.mxu0 0
      %1402 = vmatprep.subr.bf16.mxu0 0
      %1403 = vmatpush1.bf16.msra.mxu0 0
      %1404 = vmatprep.subr.bf16.mxu0 0
      %1405 = vmatpush1.bf16.msra.mxu0 0
      %1406 = vmatprep.subr.bf16.mxu0 0
      %1407 = vmatpush1.bf16.msra.mxu0 0
      %1408 = vmatprep.subr.bf16.mxu0 0
      %1409 = vmatpush1.bf16.msra.mxu0 0
      %1410 = vmatprep.subr.bf16.mxu0 0
      %1411 = vmatpush1.bf16.msra.mxu0 0
      %1412 = vmatprep.subr.bf16.mxu0 0
      %1413 = vmatpush1.bf16.msra.mxu0 0
      %1414 = vmatprep.subr.bf16.mxu0 0
      %1415 = vmatpush1.bf16.msra.mxu0 0
      %1416 = vmatprep.subr.bf16.mxu0 0
      %1417 = vmatpush1.bf16.msra.mxu0 0
      %1418 = vmatprep.subr.bf16.mxu0 0
      %1419 = vmatpush1.bf16.msra.mxu0 0
      %1420 = vmatprep.subr.bf16.mxu0 0
      %1421 = vmatpush1.bf16.msra.mxu0 0
      %1422 = vmatprep.mubr.bf16.mxu0 0
      %1423 = vmatmul.mubr.bf16.gmra.mrb[0].mxu0 %v1370
      %v1424 = vpop.f32.mrb[0].mxu0
      %v1425 = vadd.f32 %v1352, %v1424
      %v1426 = vpop.f32.mrb[0].mxu0
      %v1427 = vpop.f32.mrb[0].mxu0
      %v1428 = vpop.f32.mrb[0].mxu0
      %1429 = vmatprep.mubr.bf16.mxu0 0
      %1430 = vmatmul.mubr.bf16.gmra.mrb[0].mxu0 %v1372
      %v1431 = vpop.f32.mrb[0].mxu0
      %v1432 = vadd.f32 %v1352, %v1431
      %v1433 = vpop.f32.mrb[0].mxu0
      %v1434 = vpop.f32.mrb[0].mxu0
      %v1435 = vpop.f32.mrb[0].mxu0
      %1436 = vmatprep.mubr.bf16.mxu0 0
      %1437 = vmatmul.mubr.bf16.gmra.mrb[0].mxu0 %v1374
      %v1438 = vpop.f32.mrb[0].mxu0
      %v1439 = vadd.f32 %v1352, %v1438
      %v1440 = vpop.f32.mrb[0].mxu0
      %v1441 = vpop.f32.mrb[0].mxu0
      %v1442 = vpop.f32.mrb[0].mxu0
      %1443 = vmatprep.mubr.bf16.mxu0 0
      %1444 = vmatmul.mubr.bf16.gmra.mrb[0].mxu0 %v1376
      %v1445 = vpop.f32.mrb[0].mxu0
      %v1446 = vadd.f32 %v1352, %v1445
      %v1447 = vpop.f32.mrb[0].mxu0
      %v1448 = vpop.f32.mrb[0].mxu0
      %v1449 = vpop.f32.mrb[0].mxu0
      %1450 = vmatprep.mubr.bf16.mxu0 0
      %1451 = vmatmul.mubr.bf16.gmra.mrb[0].mxu0 %v1378
      %v1452 = vpop.f32.mrb[0].mxu0
      %v1453 = vadd.f32 %v1352, %v1452
      %v1454 = vpop.f32.mrb[0].mxu0
      %v1455 = vpop.f32.mrb[0].mxu0
      %v1456 = vpop.f32.mrb[0].mxu0
      %1457 = vmatprep.mubr.bf16.mxu0 0
      %1458 = vmatmul.mubr.bf16.gmra.mrb[0].mxu0 %v1380
      %v1459 = vpop.f32.mrb[0].mxu0
      %v1460 = vadd.f32 %v1352, %v1459
      %v1461 = vpop.f32.mrb[0].mxu0
      %v1462 = vpop.f32.mrb[0].mxu0
      %v1463 = vpop.f32.mrb[0].mxu0
      %1464 = vmatprep.mubr.bf16.mxu0 0
      %1465 = vmatmul.mubr.bf16.gmra.mrb[0].mxu0 %v1382
      %v1466 = vpop.f32.mrb[0].mxu0
      %v1467 = vadd.f32 %v1352, %v1466
      %v1468 = vpop.f32.mrb[0].mxu0
      %v1469 = vpop.f32.mrb[0].mxu0
      %v1470 = vpop.f32.mrb[0].mxu0
      %1471 = vmatprep.mubr.bf16.mxu0 0
      %1472 = vmatmul.mubr.bf16.gmra.mrb[0].mxu0 %v1384
      %v1473 = vpop.f32.mrb[0].mxu0
      %v1474 = vadd.f32 %v1352, %v1473
      %v1475 = vpop.f32.mrb[0].mxu0
      %v1476 = vpop.f32.mrb[0].mxu0
      %v1477 = vpop.f32.mrb[0].mxu0
      %1478 = vdwg.mxu0
      %v1479 = vmax.f32 %v1425, 0.0
      %v1480 = vmax.f32 %v1432, 0.0
      %v1481 = vmax.f32 %v1439, 0.0
      %v1482 = vmax.f32 %v1446, 0.0
      %v1483 = vmax.f32 %v1453, 0.0
      %v1484 = vmax.f32 %v1460, 0.0
      %v1485 = vmax.f32 %v1467, 0.0
      %v1486 = vmax.f32 %v1474, 0.0
      %v1487 = vpack.c.bf16 %v1479, %v1479
      %v1488 = vpack.c.bf16 %v1480, %v1480
      %v1489 = vpack.c.bf16 %v1481, %v1481
      %v1490 = vpack.c.bf16 %v1482, %v1482
      %v1491 = vpack.c.bf16 %v1483, %v1483
      %v1492 = vpack.c.bf16 %v1484, %v1484
      %v1493 = vpack.c.bf16 %v1485, %v1485
      %v1494 = vpack.c.bf16 %v1486, %v1486
      %v1503 = vunpack.c.l.b16 %v1487
      %v1504 = vunpack.c.l.b16 %v1488
      %v1505 = vunpack.c.l.b16 %v1489
      %v1506 = vunpack.c.l.b16 %v1490
      %v1507 = vunpack.c.l.b16 %v1491
      %v1508 = vunpack.c.l.b16 %v1492
      %v1509 = vunpack.c.l.b16 %v1493
      %v1510 = vunpack.c.l.b16 %v1494
      %v1511 = vpack.c.b16 %v1503, %v1503
      %v1512 = vpack.c.b16 %v1504, %v1504
      %v1513 = vpack.c.b16 %v1505, %v1505
      %v1514 = vpack.c.b16 %v1506, %v1506
      %v1515 = vpack.c.b16 %v1507, %v1507
      %v1516 = vpack.c.b16 %v1508, %v1508
      %v1517 = vpack.c.b16 %v1509, %v1509
      %v1518 = vpack.c.b16 %v1510, %v1510
      %v1520 = vshrl.u32 %v1511, 16
      %v1522 = vrot.slane %v1520, 7
      %v1523 = vshll.u32 %v1511, 16
      %v1525 = vor.u32 %v1522, %v1523
      %v1526 = vrot.slane %v1522, 4
      %v1528 = vshrl.u32 %v1512, 16
      %v1530 = vrot.slane %v1528, 7
      %v1531 = vshll.u32 %v1512, 16
      %v1533 = vor.u32 %v1530, %v1531
      %v1534 = vrot.slane %v1530, 4
      %v1536 = vshrl.u32 %v1513, 16
      %v1538 = vrot.slane %v1536, 7
      %v1539 = vshll.u32 %v1513, 16
      %v1541 = vor.u32 %v1538, %v1539
      %v1542 = vrot.slane %v1538, 4
      %v1544 = vshrl.u32 %v1514, 16
      %v1546 = vrot.slane %v1544, 7
      %v1547 = vshll.u32 %v1514, 16
      %v1549 = vor.u32 %v1546, %v1547
      %v1550 = vrot.slane %v1546, 4
      %v1552 = vshrl.u32 %v1515, 16
      %v1554 = vrot.slane %v1552, 7
      %v1555 = vshll.u32 %v1515, 16
      %v1557 = vor.u32 %v1554, %v1555
      %v1558 = vrot.slane %v1554, 4
      %v1560 = vshrl.u32 %v1516, 16
      %v1562 = vrot.slane %v1560, 7
      %v1563 = vshll.u32 %v1516, 16
      %v1565 = vor.u32 %v1562, %v1563
      %v1566 = vrot.slane %v1562, 4
      %v1568 = vshrl.u32 %v1517, 16
      %v1570 = vrot.slane %v1568, 7
      %v1571 = vshll.u32 %v1517, 16
      %v1573 = vor.u32 %v1570, %v1571
      %v1574 = vrot.slane %v1570, 4
      %v1576 = vshrl.u32 %v1518, 16
      %v1578 = vrot.slane %v1576, 7
      %v1579 = vshll.u32 %v1518, 16
      %v1581 = vor.u32 %v1578, %v1579
      %v1582 = vrot.slane %v1578, 4
      %v1599 = vld [vmem:[%s289] sm:$0xf]
      %v1600 = vsel %vm319, %v1525, %v1599
      %1601 = vst [vmem:[%s289] sm:$0xf] %v1600
      %v1602 = vld [vmem:[%s289 + $0x4] sm:$0x1]
      %v1603 = vsel %vm292, %v1526, %v1602
      %1604 = vst [vmem:[%s289 + $0x4] sm:$0x1] %v1603
      %v1605 = vld [vmem:[%s289 + $0xc] sm:$0xf]
      %v1606 = vsel %vm319, %v1533, %v1605
      %1607 = vst [vmem:[%s289 + $0xc] sm:$0xf] %v1606
      %v1608 = vld [vmem:[%s289 + $0x10] sm:$0x1]
      %v1609 = vsel %vm292, %v1534, %v1608
      %1610 = vst [vmem:[%s289 + $0x10] sm:$0x1] %v1609
      %v1611 = vld [vmem:[%s289 + $0x18] sm:$0xf]
      %v1612 = vsel %vm319, %v1541, %v1611
      %1613 = vst [vmem:[%s289 + $0x18] sm:$0xf] %v1612
      %v1614 = vld [vmem:[%s289 + $0x1c] sm:$0x1]
      %v1615 = vsel %vm292, %v1542, %v1614
      %1616 = vst [vmem:[%s289 + $0x1c] sm:$0x1] %v1615
      %v1617 = vld [vmem:[%s289 + $0x24] sm:$0xf]
      %v1618 = vsel %vm319, %v1549, %v1617
      %1619 = vst [vmem:[%s289 + $0x24] sm:$0xf] %v1618
      %v1620 = vld [vmem:[%s289 + $0x28] sm:$0x1]
      %v1621 = vsel %vm292, %v1550, %v1620
      %1622 = vst [vmem:[%s289 + $0x28] sm:$0x1] %v1621
      %v1623 = vld [vmem:[%s289 + $0x30] sm:$0xf]
      %v1624 = vsel %vm319, %v1557, %v1623
      %1625 = vst [vmem:[%s289 + $0x30] sm:$0xf] %v1624
      %v1626 = vld [vmem:[%s289 + $0x34] sm:$0x1]
      %v1627 = vsel %vm292, %v1558, %v1626
      %1628 = vst [vmem:[%s289 + $0x34] sm:$0x1] %v1627
      %v1629 = vld [vmem:[%s289 + $0x3c] sm:$0xf]
      %v1630 = vsel %vm319, %v1565, %v1629
      %1631 = vst [vmem:[%s289 + $0x3c] sm:$0xf] %v1630
      %v1632 = vld [vmem:[%s289 + $0x40] sm:$0x1]
      %v1633 = vsel %vm292, %v1566, %v1632
      %1634 = vst [vmem:[%s289 + $0x40] sm:$0x1] %v1633
      %v1635 = vld [vmem:[%s289 + $0x48] sm:$0xf]
      %v1636 = vsel %vm319, %v1573, %v1635
      %1637 = vst [vmem:[%s289 + $0x48] sm:$0xf] %v1636
      %v1638 = vld [vmem:[%s289 + $0x4c] sm:$0x1]
      %v1639 = vsel %vm292, %v1574, %v1638
      %1640 = vst [vmem:[%s289 + $0x4c] sm:$0x1] %v1639
      %v1641 = vld [vmem:[%s289 + $0x54] sm:$0xf]
      %v1642 = vsel %vm319, %v1581, %v1641
      %1643 = vst [vmem:[%s289 + $0x54] sm:$0xf] %v1642
      %v1644 = vld [vmem:[%s289 + $0x58] sm:$0x1]
      %v1645 = vsel %vm292, %v1582, %v1644
      %1646 = vst [vmem:[%s289 + $0x58] sm:$0x1] %v1645
      %v1647 = vld [vmem:[#allocation2] sm:$0xf]
      %v1648 = vld [vmem:[#allocation2 + $0x4] sm:$0xf]
      %v1649 = vld [vmem:[#allocation2 + $0xc] sm:$0xf]
      %v1650 = vld [vmem:[#allocation2 + $0x10] sm:$0xf]
      %v1651 = vld [vmem:[#allocation2 + $0x18] sm:$0xf]
      %v1652 = vld [vmem:[#allocation2 + $0x1c] sm:$0xf]
      %v1653 = vld [vmem:[#allocation2 + $0x24] sm:$0xf]
      %v1654 = vld [vmem:[#allocation2 + $0x28] sm:$0xf]
      %v1655 = vld [vmem:[#allocation2 + $0x30] sm:$0xf]
      %v1656 = vld [vmem:[#allocation2 + $0x34] sm:$0xf]
      %v1657 = vld [vmem:[#allocation2 + $0x3c] sm:$0xf]
      %v1658 = vld [vmem:[#allocation2 + $0x40] sm:$0xf]
      %v1659 = vld [vmem:[#allocation2 + $0x48] sm:$0xf]
      %v1660 = vld [vmem:[#allocation2 + $0x4c] sm:$0xf]
      %v1661 = vld [vmem:[#allocation2 + $0x54] sm:$0xf]
      %v1662 = vld [vmem:[#allocation2 + $0x58] sm:$0xf]
      %v1663 = vld [vmem:[#allocation2 + $0x8] sm:$0x1]
      %v1664 = vld [vmem:[#allocation2 + $0x14] sm:$0x1]
      %v1665 = vld [vmem:[#allocation2 + $0x20] sm:$0x1]
      %v1666 = vld [vmem:[#allocation2 + $0x2c] sm:$0x1]
      %v1667 = vld [vmem:[#allocation2 + $0x38] sm:$0x1]
      %v1668 = vld [vmem:[#allocation2 + $0x44] sm:$0x1]
      %v1669 = vld [vmem:[#allocation2 + $0x50] sm:$0x1]
      %v1670 = vld [vmem:[#allocation2 + $0x5c] sm:$0x1]
      %v1671 = vld [vmem:[#allocation2] sm:$0xe]
      %v1672 = vld [vmem:[#allocation2 + $0xc] sm:$0xe]
      %v1673 = vld [vmem:[#allocation2 + $0x18] sm:$0xe]
      %v1674 = vld [vmem:[#allocation2 + $0x24] sm:$0xe]
      %v1675 = vld [vmem:[#allocation2 + $0x30] sm:$0xe]
      %v1676 = vld [vmem:[#allocation2 + $0x3c] sm:$0xe]
      %v1677 = vld [vmem:[#allocation2 + $0x48] sm:$0xe]
      %v1678 = vld [vmem:[#allocation2 + $0x54] sm:$0xe]
      %v1679 = vld [vmem:[%s289] sm:$0xf]
      %v1680 = vld [vmem:[%s289 + $0x4] sm:$0xf]
      %v1681 = vld [vmem:[%s289 + $0xc] sm:$0xf]
      %v1682 = vld [vmem:[%s289 + $0x10] sm:$0xf]
      %v1683 = vld [vmem:[%s289 + $0x18] sm:$0xf]
      %v1684 = vld [vmem:[%s289 + $0x1c] sm:$0xf]
      %v1685 = vld [vmem:[%s289 + $0x24] sm:$0xf]
      %v1686 = vld [vmem:[%s289 + $0x28] sm:$0xf]
      %v1687 = vld [vmem:[%s289 + $0x30] sm:$0xf]
      %v1688 = vld [vmem:[%s289 + $0x34] sm:$0xf]
      %v1689 = vld [vmem:[%s289 + $0x3c] sm:$0xf]
      %v1690 = vld [vmem:[%s289 + $0x40] sm:$0xf]
      %v1691 = vld [vmem:[%s289 + $0x48] sm:$0xf]
      %v1692 = vld [vmem:[%s289 + $0x4c] sm:$0xf]
      %v1693 = vld [vmem:[%s289 + $0x54] sm:$0xf]
      %v1694 = vld [vmem:[%s289 + $0x58] sm:$0xf]
      %v1695 = vld [vmem:[%s289 + $0x8] sm:$0x1]
      %v1696 = vld [vmem:[%s289 + $0x14] sm:$0x1]
      %v1697 = vld [vmem:[%s289 + $0x20] sm:$0x1]
      %v1698 = vld [vmem:[%s289 + $0x2c] sm:$0x1]
      %v1699 = vld [vmem:[%s289 + $0x38] sm:$0x1]
      %v1700 = vld [vmem:[%s289 + $0x44] sm:$0x1]
      %v1701 = vld [vmem:[%s289 + $0x50] sm:$0x1]
      %v1702 = vld [vmem:[%s289 + $0x5c] sm:$0x1]
      %v1703 = vld [vmem:[%s289] sm:$0xe]
      %v1704 = vld [vmem:[%s289 + $0xc] sm:$0xe]
      %v1705 = vld [vmem:[%s289 + $0x18] sm:$0xe]
      %v1706 = vld [vmem:[%s289 + $0x24] sm:$0xe]
      %v1707 = vld [vmem:[%s289 + $0x30] sm:$0xe]
      %v1708 = vld [vmem:[%s289 + $0x3c] sm:$0xe]
      %v1709 = vld [vmem:[%s289 + $0x48] sm:$0xe]
      %v1710 = vld [vmem:[%s289 + $0x54] sm:$0xe]
      %s1711 = scalar_lea.vmem [#allocation2], 24
      %v1712 = vld [vmem:[%s1711] sm:$0xf]
      %v1713 = vld [vmem:[%s1711 + $0x4] sm:$0xf]
      %v1714 = vld [vmem:[%s1711 + $0xc] sm:$0xf]
      %v1715 = vld [vmem:[%s1711 + $0x10] sm:$0xf]
      %v1716 = vld [vmem:[%s1711 + $0x18] sm:$0xf]
      %v1717 = vld [vmem:[%s1711 + $0x1c] sm:$0xf]
      %v1718 = vld [vmem:[%s1711 + $0x24] sm:$0xf]
      %v1719 = vld [vmem:[%s1711 + $0x28] sm:$0xf]
      %v1720 = vld [vmem:[%s1711 + $0x30] sm:$0xf]
      %v1721 = vld [vmem:[%s1711 + $0x34] sm:$0xf]
      %v1722 = vld [vmem:[%s1711 + $0x3c] sm:$0xf]
      %v1723 = vld [vmem:[%s1711 + $0x40] sm:$0xf]
      %v1724 = vld [vmem:[%s1711 + $0x48] sm:$0xf]
      %v1725 = vld [vmem:[%s1711 + $0x4c] sm:$0xf]
      %v1726 = vld [vmem:[%s1711 + $0x54] sm:$0xf]
      %v1727 = vld [vmem:[%s1711 + $0x58] sm:$0xf]
      %v1728 = vld [vmem:[%s1711 + $0x8] sm:$0x1]
      %v1729 = vld [vmem:[%s1711 + $0x14] sm:$0x1]
      %v1730 = vld [vmem:[%s1711 + $0x20] sm:$0x1]
      %v1731 = vld [vmem:[%s1711 + $0x2c] sm:$0x1]
      %v1732 = vld [vmem:[%s1711 + $0x38] sm:$0x1]
      %v1733 = vld [vmem:[%s1711 + $0x44] sm:$0x1]
      %v1734 = vld [vmem:[%s1711 + $0x50] sm:$0x1]
      %v1735 = vld [vmem:[%s1711 + $0x5c] sm:$0x1]
      %v1736 = vld [vmem:[%s1711] sm:$0xe]
      %v1737 = vld [vmem:[%s1711 + $0xc] sm:$0xe]
      %v1738 = vld [vmem:[%s1711 + $0x18] sm:$0xe]
      %v1739 = vld [vmem:[%s1711 + $0x24] sm:$0xe]
      %v1740 = vld [vmem:[%s1711 + $0x30] sm:$0xe]
      %v1741 = vld [vmem:[%s1711 + $0x3c] sm:$0xe]
      %v1742 = vld [vmem:[%s1711 + $0x48] sm:$0xe]
      %v1743 = vld [vmem:[%s1711 + $0x54] sm:$0xe]
      %v1760 = vunpack.c.l.b16 %v1647
      %v1761 = vunpack.c.l.b16 %v1648
      %v1762 = vunpack.c.l.b16 %v1649
      %v1763 = vunpack.c.l.b16 %v1650
      %v1764 = vunpack.c.l.b16 %v1651
      %v1765 = vunpack.c.l.b16 %v1652
      %v1766 = vunpack.c.l.b16 %v1653
      %v1767 = vunpack.c.l.b16 %v1654
      %v1768 = vunpack.c.l.b16 %v1655
      %v1769 = vunpack.c.l.b16 %v1656
      %v1770 = vunpack.c.l.b16 %v1657
      %v1771 = vunpack.c.l.b16 %v1658
      %v1772 = vunpack.c.l.b16 %v1659
      %v1773 = vunpack.c.l.b16 %v1660
      %v1774 = vunpack.c.l.b16 %v1661
      %v1775 = vunpack.c.l.b16 %v1662
      %v1776 = vpack.c.b16 %v1761, %v1760
      %v1777 = vpack.c.b16 %v1763, %v1762
      %v1778 = vpack.c.b16 %v1765, %v1764
      %v1779 = vpack.c.b16 %v1767, %v1766
      %v1780 = vpack.c.b16 %v1769, %v1768
      %v1781 = vpack.c.b16 %v1771, %v1770
      %v1782 = vpack.c.b16 %v1773, %v1772
      %v1783 = vpack.c.b16 %v1775, %v1774
      %v1792 = vunpack.c.l.b16 %v1663
      %v1793 = vunpack.c.l.b16 %v1664
      %v1794 = vunpack.c.l.b16 %v1665
      %v1795 = vunpack.c.l.b16 %v1666
      %v1796 = vunpack.c.l.b16 %v1667
      %v1797 = vunpack.c.l.b16 %v1668
      %v1798 = vunpack.c.l.b16 %v1669
      %v1799 = vunpack.c.l.b16 %v1670
      %v1800 = vpack.c.b16 %v1792, %v1792
      %v1801 = vpack.c.b16 %v1793, %v1793
      %v1802 = vpack.c.b16 %v1794, %v1794
      %v1803 = vpack.c.b16 %v1795, %v1795
      %v1804 = vpack.c.b16 %v1796, %v1796
      %v1805 = vpack.c.b16 %v1797, %v1797
      %v1806 = vpack.c.b16 %v1798, %v1798
      %v1807 = vpack.c.b16 %v1799, %v1799
      %v1809 = vshrl.u32 %v1776, 16
      %v1811 = vshll.u32 %v1776, 16
      %v1813 = vrot.slane %v1811, 1
      %v1814 = vor.u32 %v1809, %v1813
      %v1816 = vshll.u32 %v1800, 16
      %v1818 = vrot.slane %v1816, 1
      %v1819 = vsel %vm597, %v1814, %v1818
      %v1821 = vshrl.u32 %v1777, 16
      %v1823 = vshll.u32 %v1777, 16
      %v1825 = vrot.slane %v1823, 1
      %v1826 = vor.u32 %v1821, %v1825
      %v1828 = vshll.u32 %v1801, 16
      %v1830 = vrot.slane %v1828, 1
      %v1831 = vsel %vm597, %v1826, %v1830
      %v1833 = vshrl.u32 %v1778, 16
      %v1835 = vshll.u32 %v1778, 16
      %v1837 = vrot.slane %v1835, 1
      %v1838 = vor.u32 %v1833, %v1837
      %v1840 = vshll.u32 %v1802, 16
      %v1842 = vrot.slane %v1840, 1
      %v1843 = vsel %vm597, %v1838, %v1842
      %v1845 = vshrl.u32 %v1779, 16
      %v1847 = vshll.u32 %v1779, 16
      %v1849 = vrot.slane %v1847, 1
      %v1850 = vor.u32 %v1845, %v1849
      %v1852 = vshll.u32 %v1803, 16
      %v1854 = vrot.slane %v1852, 1
      %v1855 = vsel %vm597, %v1850, %v1854
      %v1857 = vshrl.u32 %v1780, 16
      %v1859 = vshll.u32 %v1780, 16
      %v1861 = vrot.slane %v1859, 1
      %v1862 = vor.u32 %v1857, %v1861
      %v1864 = vshll.u32 %v1804, 16
      %v1866 = vrot.slane %v1864, 1
      %v1867 = vsel %vm597, %v1862, %v1866
      %v1869 = vshrl.u32 %v1781, 16
      %v1871 = vshll.u32 %v1781, 16
      %v1873 = vrot.slane %v1871, 1
      %v1874 = vor.u32 %v1869, %v1873
      %v1876 = vshll.u32 %v1805, 16
      %v1878 = vrot.slane %v1876, 1
      %v1879 = vsel %vm597, %v1874, %v1878
      %v1881 = vshrl.u32 %v1782, 16
      %v1883 = vshll.u32 %v1782, 16
      %v1885 = vrot.slane %v1883, 1
      %v1886 = vor.u32 %v1881, %v1885
      %v1888 = vshll.u32 %v1806, 16
      %v1890 = vrot.slane %v1888, 1
      %v1891 = vsel %vm597, %v1886, %v1890
      %v1893 = vshrl.u32 %v1783, 16
      %v1895 = vshll.u32 %v1783, 16
      %v1897 = vrot.slane %v1895, 1
      %v1898 = vor.u32 %v1893, %v1897
      %v1900 = vshll.u32 %v1807, 16
      %v1902 = vrot.slane %v1900, 1
      %v1903 = vsel %vm597, %v1898, %v1902
      %1904 = vrot.lane.b32.xlu0 %v1819, 8
      %v1905 = vpop.permute.xlu0 %1904
      %1906 = vrot.lane.b32.xlu0 %v1831, 8
      %v1907 = vpop.permute.xlu0 %1906
      %1908 = vrot.lane.b32.xlu0 %v1843, 8
      %v1909 = vpop.permute.xlu0 %1908
      %1910 = vrot.lane.b32.xlu0 %v1855, 8
      %v1911 = vpop.permute.xlu0 %1910
      %1912 = vrot.lane.b32.xlu0 %v1867, 8
      %v1913 = vpop.permute.xlu0 %1912
      %1914 = vrot.lane.b32.xlu0 %v1879, 8
      %v1915 = vpop.permute.xlu0 %1914
      %1916 = vrot.lane.b32.xlu0 %v1891, 8
      %v1917 = vpop.permute.xlu0 %1916
      %1918 = vrot.lane.b32.xlu0 %v1903, 8
      %v1919 = vpop.permute.xlu0 %1918
      %v1928 = vunpack.c.l.b16 %v1671
      %v1929 = vunpack.c.l.b16 %v1672
      %v1930 = vunpack.c.l.b16 %v1673
      %v1931 = vunpack.c.l.b16 %v1674
      %v1932 = vunpack.c.l.b16 %v1675
      %v1933 = vunpack.c.l.b16 %v1676
      %v1934 = vunpack.c.l.b16 %v1677
      %v1935 = vunpack.c.l.b16 %v1678
      %v1936 = vpack.c.b16 %v1761, %v1928
      %v1937 = vpack.c.b16 %v1763, %v1929
      %v1938 = vpack.c.b16 %v1765, %v1930
      %v1939 = vpack.c.b16 %v1767, %v1931
      %v1940 = vpack.c.b16 %v1769, %v1932
      %v1941 = vpack.c.b16 %v1771, %v1933
      %v1942 = vpack.c.b16 %v1773, %v1934
      %v1943 = vpack.c.b16 %v1775, %v1935
      %vm1944 = vcmask 1046528
      %v1945 = vrot.slane %v1936, 1
      %v1946 = vrot.slane %v1800, 1
      %v1947 = vsel %vm1944, %v1945, %v1946
      %v1948 = vrot.slane %v1937, 1
      %v1949 = vrot.slane %v1801, 1
      %v1950 = vsel %vm1944, %v1948, %v1949
      %v1951 = vrot.slane %v1938, 1
      %v1952 = vrot.slane %v1802, 1
      %v1953 = vsel %vm1944, %v1951, %v1952
      %v1954 = vrot.slane %v1939, 1
      %v1955 = vrot.slane %v1803, 1
      %v1956 = vsel %vm1944, %v1954, %v1955
      %v1957 = vrot.slane %v1940, 1
      %v1958 = vrot.slane %v1804, 1
      %v1959 = vsel %vm1944, %v1957, %v1958
      %v1960 = vrot.slane %v1941, 1
      %v1961 = vrot.slane %v1805, 1
      %v1962 = vsel %vm1944, %v1960, %v1961
      %v1963 = vrot.slane %v1942, 1
      %v1964 = vrot.slane %v1806, 1
      %v1965 = vsel %vm1944, %v1963, %v1964
      %v1966 = vrot.slane %v1943, 1
      %v1967 = vrot.slane %v1807, 1
      %v1968 = vsel %vm1944, %v1966, %v1967
      %1969 = vrot.lane.b32.xlu0 %v1947, 16
      %v1970 = vpop.permute.xlu0 %1969
      %1971 = vrot.lane.b32.xlu0 %v1950, 16
      %v1972 = vpop.permute.xlu0 %1971
      %1973 = vrot.lane.b32.xlu0 %v1953, 16
      %v1974 = vpop.permute.xlu0 %1973
      %1975 = vrot.lane.b32.xlu0 %v1956, 16
      %v1976 = vpop.permute.xlu0 %1975
      %1977 = vrot.lane.b32.xlu0 %v1959, 16
      %v1978 = vpop.permute.xlu0 %1977
      %1979 = vrot.lane.b32.xlu0 %v1962, 16
      %v1980 = vpop.permute.xlu0 %1979
      %1981 = vrot.lane.b32.xlu0 %v1965, 16
      %v1982 = vpop.permute.xlu0 %1981
      %1983 = vrot.lane.b32.xlu0 %v1968, 16
      %v1984 = vpop.permute.xlu0 %1983
      %v2001 = vunpack.c.l.b16 %v1679
      %v2002 = vunpack.c.l.b16 %v1680
      %v2003 = vunpack.c.l.b16 %v1681
      %v2004 = vunpack.c.l.b16 %v1682
      %v2005 = vunpack.c.l.b16 %v1683
      %v2006 = vunpack.c.l.b16 %v1684
      %v2007 = vunpack.c.l.b16 %v1685
      %v2008 = vunpack.c.l.b16 %v1686
      %v2009 = vunpack.c.l.b16 %v1687
      %v2010 = vunpack.c.l.b16 %v1688
      %v2011 = vunpack.c.l.b16 %v1689
      %v2012 = vunpack.c.l.b16 %v1690
      %v2013 = vunpack.c.l.b16 %v1691
      %v2014 = vunpack.c.l.b16 %v1692
      %v2015 = vunpack.c.l.b16 %v1693
      %v2016 = vunpack.c.l.b16 %v1694
      %v2017 = vpack.c.b16 %v2002, %v2001
      %v2018 = vpack.c.b16 %v2004, %v2003
      %v2019 = vpack.c.b16 %v2006, %v2005
      %v2020 = vpack.c.b16 %v2008, %v2007
      %v2021 = vpack.c.b16 %v2010, %v2009
      %v2022 = vpack.c.b16 %v2012, %v2011
      %v2023 = vpack.c.b16 %v2014, %v2013
      %v2024 = vpack.c.b16 %v2016, %v2015
      %2025 = vrot.lane.b32.xlu0 %v2017, 24
      %v2026 = vpop.permute.xlu0 %2025
      %2027 = vrot.lane.b32.xlu0 %v2018, 24
      %v2028 = vpop.permute.xlu0 %2027
      %2029 = vrot.lane.b32.xlu0 %v2019, 24
      %v2030 = vpop.permute.xlu0 %2029
      %2031 = vrot.lane.b32.xlu0 %v2020, 24
      %v2032 = vpop.permute.xlu0 %2031
      %2033 = vrot.lane.b32.xlu0 %v2021, 24
      %v2034 = vpop.permute.xlu0 %2033
      %2035 = vrot.lane.b32.xlu0 %v2022, 24
      %v2036 = vpop.permute.xlu0 %2035
      %2037 = vrot.lane.b32.xlu0 %v2023, 24
      %v2038 = vpop.permute.xlu0 %2037
      %2039 = vrot.lane.b32.xlu0 %v2024, 24
      %v2040 = vpop.permute.xlu0 %2039
      %v2049 = vunpack.c.l.b16 %v1695
      %v2050 = vunpack.c.l.b16 %v1696
      %v2051 = vunpack.c.l.b16 %v1697
      %v2052 = vunpack.c.l.b16 %v1698
      %v2053 = vunpack.c.l.b16 %v1699
      %v2054 = vunpack.c.l.b16 %v1700
      %v2055 = vunpack.c.l.b16 %v1701
      %v2056 = vunpack.c.l.b16 %v1702
      %v2057 = vpack.c.b16 %v2049, %v2049
      %v2058 = vpack.c.b16 %v2050, %v2050
      %v2059 = vpack.c.b16 %v2051, %v2051
      %v2060 = vpack.c.b16 %v2052, %v2052
      %v2061 = vpack.c.b16 %v2053, %v2053
      %v2062 = vpack.c.b16 %v2054, %v2054
      %v2063 = vpack.c.b16 %v2055, %v2055
      %v2064 = vpack.c.b16 %v2056, %v2056
      %v2066 = vshrl.u32 %v2017, 16
      %v2068 = vshll.u32 %v2017, 16
      %v2070 = vrot.slane %v2068, 1
      %v2071 = vor.u32 %v2066, %v2070
      %v2073 = vshll.u32 %v2057, 16
      %v2075 = vrot.slane %v2073, 1
      %v2076 = vsel %vm597, %v2071, %v2075
      %v2078 = vshrl.u32 %v2018, 16
      %v2080 = vshll.u32 %v2018, 16
      %v2082 = vrot.slane %v2080, 1
      %v2083 = vor.u32 %v2078, %v2082
      %v2085 = vshll.u32 %v2058, 16
      %v2087 = vrot.slane %v2085, 1
      %v2088 = vsel %vm597, %v2083, %v2087
      %v2090 = vshrl.u32 %v2019, 16
      %v2092 = vshll.u32 %v2019, 16
      %v2094 = vrot.slane %v2092, 1
      %v2095 = vor.u32 %v2090, %v2094
      %v2097 = vshll.u32 %v2059, 16
      %v2099 = vrot.slane %v2097, 1
      %v2100 = vsel %vm597, %v2095, %v2099
      %v2102 = vshrl.u32 %v2020, 16
      %v2104 = vshll.u32 %v2020, 16
      %v2106 = vrot.slane %v2104, 1
      %v2107 = vor.u32 %v2102, %v2106
      %v2109 = vshll.u32 %v2060, 16
      %v2111 = vrot.slane %v2109, 1
      %v2112 = vsel %vm597, %v2107, %v2111
      %v2114 = vshrl.u32 %v2021, 16
      %v2116 = vshll.u32 %v2021, 16
      %v2118 = vrot.slane %v2116, 1
      %v2119 = vor.u32 %v2114, %v2118
      %v2121 = vshll.u32 %v2061, 16
      %v2123 = vrot.slane %v2121, 1
      %v2124 = vsel %vm597, %v2119, %v2123
      %v2126 = vshrl.u32 %v2022, 16
      %v2128 = vshll.u32 %v2022, 16
      %v2130 = vrot.slane %v2128, 1
      %v2131 = vor.u32 %v2126, %v2130
      %v2133 = vshll.u32 %v2062, 16
      %v2135 = vrot.slane %v2133, 1
      %v2136 = vsel %vm597, %v2131, %v2135
      %v2138 = vshrl.u32 %v2023, 16
      %v2140 = vshll.u32 %v2023, 16
      %v2142 = vrot.slane %v2140, 1
      %v2143 = vor.u32 %v2138, %v2142
      %v2145 = vshll.u32 %v2063, 16
      %v2147 = vrot.slane %v2145, 1
      %v2148 = vsel %vm597, %v2143, %v2147
      %v2150 = vshrl.u32 %v2024, 16
      %v2152 = vshll.u32 %v2024, 16
      %v2154 = vrot.slane %v2152, 1
      %v2155 = vor.u32 %v2150, %v2154
      %v2157 = vshll.u32 %v2064, 16
      %v2159 = vrot.slane %v2157, 1
      %v2160 = vsel %vm597, %v2155, %v2159
      %2161 = vrot.lane.b32.xlu0 %v2076, 32
      %v2162 = vpop.permute.xlu0 %2161
      %2163 = vrot.lane.b32.xlu0 %v2088, 32
      %v2164 = vpop.permute.xlu0 %2163
      %2165 = vrot.lane.b32.xlu0 %v2100, 32
      %v2166 = vpop.permute.xlu0 %2165
      %2167 = vrot.lane.b32.xlu0 %v2112, 32
      %v2168 = vpop.permute.xlu0 %2167
      %2169 = vrot.lane.b32.xlu0 %v2124, 32
      %v2170 = vpop.permute.xlu0 %2169
      %2171 = vrot.lane.b32.xlu0 %v2136, 32
      %v2172 = vpop.permute.xlu0 %2171
      %2173 = vrot.lane.b32.xlu0 %v2148, 32
      %v2174 = vpop.permute.xlu0 %2173
      %2175 = vrot.lane.b32.xlu0 %v2160, 32
      %v2176 = vpop.permute.xlu0 %2175
      %v2185 = vunpack.c.l.b16 %v1703
      %v2186 = vunpack.c.l.b16 %v1704
      %v2187 = vunpack.c.l.b16 %v1705
      %v2188 = vunpack.c.l.b16 %v1706
      %v2189 = vunpack.c.l.b16 %v1707
      %v2190 = vunpack.c.l.b16 %v1708
      %v2191 = vunpack.c.l.b16 %v1709
      %v2192 = vunpack.c.l.b16 %v1710
      %v2193 = vpack.c.b16 %v2002, %v2185
      %v2194 = vpack.c.b16 %v2004, %v2186
      %v2195 = vpack.c.b16 %v2006, %v2187
      %v2196 = vpack.c.b16 %v2008, %v2188
      %v2197 = vpack.c.b16 %v2010, %v2189
      %v2198 = vpack.c.b16 %v2012, %v2190
      %v2199 = vpack.c.b16 %v2014, %v2191
      %v2200 = vpack.c.b16 %v2016, %v2192
      %v2201 = vrot.slane %v2193, 1
      %v2202 = vrot.slane %v2057, 1
      %v2203 = vsel %vm1944, %v2201, %v2202
      %v2204 = vrot.slane %v2194, 1
      %v2205 = vrot.slane %v2058, 1
      %v2206 = vsel %vm1944, %v2204, %v2205
      %v2207 = vrot.slane %v2195, 1
      %v2208 = vrot.slane %v2059, 1
      %v2209 = vsel %vm1944, %v2207, %v2208
      %v2210 = vrot.slane %v2196, 1
      %v2211 = vrot.slane %v2060, 1
      %v2212 = vsel %vm1944, %v2210, %v2211
      %v2213 = vrot.slane %v2197, 1
      %v2214 = vrot.slane %v2061, 1
      %v2215 = vsel %vm1944, %v2213, %v2214
      %v2216 = vrot.slane %v2198, 1
      %v2217 = vrot.slane %v2062, 1
      %v2218 = vsel %vm1944, %v2216, %v2217
      %v2219 = vrot.slane %v2199, 1
      %v2220 = vrot.slane %v2063, 1
      %v2221 = vsel %vm1944, %v2219, %v2220
      %v2222 = vrot.slane %v2200, 1
      %v2223 = vrot.slane %v2064, 1
      %v2224 = vsel %vm1944, %v2222, %v2223
      %2225 = vrot.lane.b32.xlu0 %v2203, 40
      %v2226 = vpop.permute.xlu0 %2225
      %2227 = vrot.lane.b32.xlu0 %v2206, 40
      %v2228 = vpop.permute.xlu0 %2227
      %2229 = vrot.lane.b32.xlu0 %v2209, 40
      %v2230 = vpop.permute.xlu0 %2229
      %2231 = vrot.lane.b32.xlu0 %v2212, 40
      %v2232 = vpop.permute.xlu0 %2231
      %2233 = vrot.lane.b32.xlu0 %v2215, 40
      %v2234 = vpop.permute.xlu0 %2233
      %2235 = vrot.lane.b32.xlu0 %v2218, 40
      %v2236 = vpop.permute.xlu0 %2235
      %2237 = vrot.lane.b32.xlu0 %v2221, 40
      %v2238 = vpop.permute.xlu0 %2237
      %2239 = vrot.lane.b32.xlu0 %v2224, 40
      %v2240 = vpop.permute.xlu0 %2239
      %v2257 = vunpack.c.l.b16 %v1712
      %v2258 = vunpack.c.l.b16 %v1713
      %v2259 = vunpack.c.l.b16 %v1714
      %v2260 = vunpack.c.l.b16 %v1715
      %v2261 = vunpack.c.l.b16 %v1716
      %v2262 = vunpack.c.l.b16 %v1717
      %v2263 = vunpack.c.l.b16 %v1718
      %v2264 = vunpack.c.l.b16 %v1719
      %v2265 = vunpack.c.l.b16 %v1720
      %v2266 = vunpack.c.l.b16 %v1721
      %v2267 = vunpack.c.l.b16 %v1722
      %v2268 = vunpack.c.l.b16 %v1723
      %v2269 = vunpack.c.l.b16 %v1724
      %v2270 = vunpack.c.l.b16 %v1725
      %v2271 = vunpack.c.l.b16 %v1726
      %v2272 = vunpack.c.l.b16 %v1727
      %v2273 = vpack.c.b16 %v2258, %v2257
      %v2274 = vpack.c.b16 %v2260, %v2259
      %v2275 = vpack.c.b16 %v2262, %v2261
      %v2276 = vpack.c.b16 %v2264, %v2263
      %v2277 = vpack.c.b16 %v2266, %v2265
      %v2278 = vpack.c.b16 %v2268, %v2267
      %v2279 = vpack.c.b16 %v2270, %v2269
      %v2280 = vpack.c.b16 %v2272, %v2271
      %2281 = vrot.lane.b32.xlu0 %v2273, 48
      %v2282 = vpop.permute.xlu0 %2281
      %2283 = vrot.lane.b32.xlu0 %v2274, 48
      %v2284 = vpop.permute.xlu0 %2283
      %2285 = vrot.lane.b32.xlu0 %v2275, 48
      %v2286 = vpop.permute.xlu0 %2285
      %2287 = vrot.lane.b32.xlu0 %v2276, 48
      %v2288 = vpop.permute.xlu0 %2287
      %2289 = vrot.lane.b32.xlu0 %v2277, 48
      %v2290 = vpop.permute.xlu0 %2289
      %2291 = vrot.lane.b32.xlu0 %v2278, 48
      %v2292 = vpop.permute.xlu0 %2291
      %2293 = vrot.lane.b32.xlu0 %v2279, 48
      %v2294 = vpop.permute.xlu0 %2293
      %2295 = vrot.lane.b32.xlu0 %v2280, 48
      %v2296 = vpop.permute.xlu0 %2295
      %v2305 = vunpack.c.l.b16 %v1728
      %v2306 = vunpack.c.l.b16 %v1729
      %v2307 = vunpack.c.l.b16 %v1730
      %v2308 = vunpack.c.l.b16 %v1731
      %v2309 = vunpack.c.l.b16 %v1732
      %v2310 = vunpack.c.l.b16 %v1733
      %v2311 = vunpack.c.l.b16 %v1734
      %v2312 = vunpack.c.l.b16 %v1735
      %v2313 = vpack.c.b16 %v2305, %v2305
      %v2314 = vpack.c.b16 %v2306, %v2306
      %v2315 = vpack.c.b16 %v2307, %v2307
      %v2316 = vpack.c.b16 %v2308, %v2308
      %v2317 = vpack.c.b16 %v2309, %v2309
      %v2318 = vpack.c.b16 %v2310, %v2310
      %v2319 = vpack.c.b16 %v2311, %v2311
      %v2320 = vpack.c.b16 %v2312, %v2312
      %v2322 = vshrl.u32 %v2273, 16
      %v2324 = vshll.u32 %v2273, 16
      %v2326 = vrot.slane %v2324, 1
      %v2327 = vor.u32 %v2322, %v2326
      %v2329 = vshll.u32 %v2313, 16
      %v2331 = vrot.slane %v2329, 1
      %v2332 = vsel %vm597, %v2327, %v2331
      %v2334 = vshrl.u32 %v2274, 16
      %v2336 = vshll.u32 %v2274, 16
      %v2338 = vrot.slane %v2336, 1
      %v2339 = vor.u32 %v2334, %v2338
      %v2341 = vshll.u32 %v2314, 16
      %v2343 = vrot.slane %v2341, 1
      %v2344 = vsel %vm597, %v2339, %v2343
      %v2346 = vshrl.u32 %v2275, 16
      %v2348 = vshll.u32 %v2275, 16
      %v2350 = vrot.slane %v2348, 1
      %v2351 = vor.u32 %v2346, %v2350
      %v2353 = vshll.u32 %v2315, 16
      %v2355 = vrot.slane %v2353, 1
      %v2356 = vsel %vm597, %v2351, %v2355
      %v2358 = vshrl.u32 %v2276, 16
      %v2360 = vshll.u32 %v2276, 16
      %v2362 = vrot.slane %v2360, 1
      %v2363 = vor.u32 %v2358, %v2362
      %v2365 = vshll.u32 %v2316, 16
      %v2367 = vrot.slane %v2365, 1
      %v2368 = vsel %vm597, %v2363, %v2367
      %v2370 = vshrl.u32 %v2277, 16
      %v2372 = vshll.u32 %v2277, 16
      %v2374 = vrot.slane %v2372, 1
      %v2375 = vor.u32 %v2370, %v2374
      %v2377 = vshll.u32 %v2317, 16
      %v2379 = vrot.slane %v2377, 1
      %v2380 = vsel %vm597, %v2375, %v2379
      %v2382 = vshrl.u32 %v2278, 16
      %v2384 = vshll.u32 %v2278, 16
      %v2386 = vrot.slane %v2384, 1
      %v2387 = vor.u32 %v2382, %v2386
      %v2389 = vshll.u32 %v2318, 16
      %v2391 = vrot.slane %v2389, 1
      %v2392 = vsel %vm597, %v2387, %v2391
      %v2394 = vshrl.u32 %v2279, 16
      %v2396 = vshll.u32 %v2279, 16
      %v2398 = vrot.slane %v2396, 1
      %v2399 = vor.u32 %v2394, %v2398
      %v2401 = vshll.u32 %v2319, 16
      %v2403 = vrot.slane %v2401, 1
      %v2404 = vsel %vm597, %v2399, %v2403
      %v2406 = vshrl.u32 %v2280, 16
      %v2408 = vshll.u32 %v2280, 16
      %v2410 = vrot.slane %v2408, 1
      %v2411 = vor.u32 %v2406, %v2410
      %v2413 = vshll.u32 %v2320, 16
      %v2415 = vrot.slane %v2413, 1
      %v2416 = vsel %vm597, %v2411, %v2415
      %2417 = vrot.lane.b32.xlu0 %v2332, 56
      %v2418 = vpop.permute.xlu0 %2417
      %2419 = vrot.lane.b32.xlu0 %v2344, 56
      %v2420 = vpop.permute.xlu0 %2419
      %2421 = vrot.lane.b32.xlu0 %v2356, 56
      %v2422 = vpop.permute.xlu0 %2421
      %2423 = vrot.lane.b32.xlu0 %v2368, 56
      %v2424 = vpop.permute.xlu0 %2423
      %2425 = vrot.lane.b32.xlu0 %v2380, 56
      %v2426 = vpop.permute.xlu0 %2425
      %2427 = vrot.lane.b32.xlu0 %v2392, 56
      %v2428 = vpop.permute.xlu0 %2427
      %2429 = vrot.lane.b32.xlu0 %v2404, 56
      %v2430 = vpop.permute.xlu0 %2429
      %2431 = vrot.lane.b32.xlu0 %v2416, 56
      %v2432 = vpop.permute.xlu0 %2431
      %v2441 = vunpack.c.l.b16 %v1736
      %v2442 = vunpack.c.l.b16 %v1737
      %v2443 = vunpack.c.l.b16 %v1738
      %v2444 = vunpack.c.l.b16 %v1739
      %v2445 = vunpack.c.l.b16 %v1740
      %v2446 = vunpack.c.l.b16 %v1741
      %v2447 = vunpack.c.l.b16 %v1742
      %v2448 = vunpack.c.l.b16 %v1743
      %v2449 = vpack.c.b16 %v2258, %v2441
      %v2450 = vpack.c.b16 %v2260, %v2442
      %v2451 = vpack.c.b16 %v2262, %v2443
      %v2452 = vpack.c.b16 %v2264, %v2444
      %v2453 = vpack.c.b16 %v2266, %v2445
      %v2454 = vpack.c.b16 %v2268, %v2446
      %v2455 = vpack.c.b16 %v2270, %v2447
      %v2456 = vpack.c.b16 %v2272, %v2448
      %v2457 = vrot.slane %v2449, 1
      %v2458 = vrot.slane %v2313, 1
      %v2459 = vsel %vm1944, %v2457, %v2458
      %v2460 = vrot.slane %v2450, 1
      %v2461 = vrot.slane %v2314, 1
      %v2462 = vsel %vm1944, %v2460, %v2461
      %v2463 = vrot.slane %v2451, 1
      %v2464 = vrot.slane %v2315, 1
      %v2465 = vsel %vm1944, %v2463, %v2464
      %v2466 = vrot.slane %v2452, 1
      %v2467 = vrot.slane %v2316, 1
      %v2468 = vsel %vm1944, %v2466, %v2467
      %v2469 = vrot.slane %v2453, 1
      %v2470 = vrot.slane %v2317, 1
      %v2471 = vsel %vm1944, %v2469, %v2470
      %v2472 = vrot.slane %v2454, 1
      %v2473 = vrot.slane %v2318, 1
      %v2474 = vsel %vm1944, %v2472, %v2473
      %v2475 = vrot.slane %v2455, 1
      %v2476 = vrot.slane %v2319, 1
      %v2477 = vsel %vm1944, %v2475, %v2476
      %v2478 = vrot.slane %v2456, 1
      %v2479 = vrot.slane %v2320, 1
      %v2480 = vsel %vm1944, %v2478, %v2479
      %2481 = vrot.lane.b32.xlu0 %v2459, 64
      %v2482 = vpop.permute.xlu0 %2481
      %2483 = vrot.lane.b32.xlu0 %v2462, 64
      %v2484 = vpop.permute.xlu0 %2483
      %2485 = vrot.lane.b32.xlu0 %v2465, 64
      %v2486 = vpop.permute.xlu0 %2485
      %2487 = vrot.lane.b32.xlu0 %v2468, 64
      %v2488 = vpop.permute.xlu0 %2487
      %2489 = vrot.lane.b32.xlu0 %v2471, 64
      %v2490 = vpop.permute.xlu0 %2489
      %2491 = vrot.lane.b32.xlu0 %v2474, 64
      %v2492 = vpop.permute.xlu0 %2491
      %2493 = vrot.lane.b32.xlu0 %v2477, 64
      %v2494 = vpop.permute.xlu0 %2493
      %2495 = vrot.lane.b32.xlu0 %v2480, 64
      %v2496 = vpop.permute.xlu0 %2495
      %v2498 = vsel %vm1223, %v1776, %v1905
      %v2500 = vsel %vm1223, %v1777, %v1907
      %v2502 = vsel %vm1223, %v1778, %v1909
      %v2504 = vsel %vm1223, %v1779, %v1911
      %v2506 = vsel %vm1223, %v1780, %v1913
      %v2508 = vsel %vm1223, %v1781, %v1915
      %v2510 = vsel %vm1223, %v1782, %v1917
      %v2512 = vsel %vm1223, %v1783, %v1919
      %v2514 = vsel %vm1257, %v2498, %v1970
      %v2516 = vsel %vm1257, %v2500, %v1972
      %v2518 = vsel %vm1257, %v2502, %v1974
      %v2520 = vsel %vm1257, %v2504, %v1976
      %v2522 = vsel %vm1257, %v2506, %v1978
      %v2524 = vsel %vm1257, %v2508, %v1980
      %v2526 = vsel %vm1257, %v2510, %v1982
      %v2528 = vsel %vm1257, %v2512, %v1984
      %v2530 = vsel %vm1291, %v2514, %v2026
      %v2532 = vsel %vm1291, %v2516, %v2028
      %v2534 = vsel %vm1291, %v2518, %v2030
      %v2536 = vsel %vm1291, %v2520, %v2032
      %v2538 = vsel %vm1291, %v2522, %v2034
      %v2540 = vsel %vm1291, %v2524, %v2036
      %v2542 = vsel %vm1291, %v2526, %v2038
      %v2544 = vsel %vm1291, %v2528, %v2040
      %v2546 = vsel %vm1325, %v2530, %v2162
      %v2548 = vsel %vm1325, %v2532, %v2164
      %v2550 = vsel %vm1325, %v2534, %v2166
      %v2552 = vsel %vm1325, %v2536, %v2168
      %v2554 = vsel %vm1325, %v2538, %v2170
      %v2556 = vsel %vm1325, %v2540, %v2172
      %v2558 = vsel %vm1325, %v2542, %v2174
      %v2560 = vsel %vm1325, %v2544, %v2176
      %vm2561 = vcmask 326656
      %v2563 = vsel %vm2561, %v2546, %v2226
      %v2565 = vsel %vm2561, %v2548, %v2228
      %v2567 = vsel %vm2561, %v2550, %v2230
      %v2569 = vsel %vm2561, %v2552, %v2232
      %v2571 = vsel %vm2561, %v2554, %v2234
      %v2573 = vsel %vm2561, %v2556, %v2236
      %v2575 = vsel %vm2561, %v2558, %v2238
      %v2577 = vsel %vm2561, %v2560, %v2240
      %vm2578 = vcmask 392192
      %v2580 = vsel %vm2578, %v2563, %v2282
      %v2582 = vsel %vm2578, %v2565, %v2284
      %v2584 = vsel %vm2578, %v2567, %v2286
      %v2586 = vsel %vm2578, %v2569, %v2288
      %v2588 = vsel %vm2578, %v2571, %v2290
      %v2590 = vsel %vm2578, %v2573, %v2292
      %v2592 = vsel %vm2578, %v2575, %v2294
      %v2594 = vsel %vm2578, %v2577, %v2296
      %vm2595 = vcmask 457728
      %v2597 = vsel %vm2595, %v2580, %v2418
      %v2599 = vsel %vm2595, %v2582, %v2420
      %v2601 = vsel %vm2595, %v2584, %v2422
      %v2603 = vsel %vm2595, %v2586, %v2424
      %v2605 = vsel %vm2595, %v2588, %v2426
      %v2607 = vsel %vm2595, %v2590, %v2428
      %v2609 = vsel %vm2595, %v2592, %v2430
      %v2611 = vsel %vm2595, %v2594, %v2432
      %vm2612 = vcmask 523264
      %v2614 = vsel %vm2612, %v2597, %v2482
      %v2616 = vsel %vm2612, %v2599, %v2484
      %v2618 = vsel %vm2612, %v2601, %v2486
      %v2620 = vsel %vm2612, %v2603, %v2488
      %v2622 = vsel %vm2612, %v2605, %v2490
      %v2624 = vsel %vm2612, %v2607, %v2492
      %v2626 = vsel %vm2612, %v2609, %v2494
      %v2628 = vsel %vm2612, %v2611, %v2496
      %v2629 = vld [vmem:[%s3] sm:$0xf]
      %v2630 = vld [vmem:[%s3 + $0x4] sm:$0xf]
      %v2631 = vld [vmem:[%s3 + $0x8] sm:$0xf]
      %v2632 = vld [vmem:[%s3 + $0xc] sm:$0xf]
      %v2633 = vld [vmem:[%s3 + $0x10] sm:$0xf]
      %v2634 = vld [vmem:[%s3 + $0x14] sm:$0xf]
      %v2635 = vld [vmem:[%s3 + $0x18] sm:$0xf]
      %v2636 = vld [vmem:[%s3 + $0x1c] sm:$0xf]
      %v2637 = vld [vmem:[%s3 + $0x20] sm:$0xf]
      %v2638 = vld [vmem:[%s4] sm:$0x1]
      %v2640 = vlaneseq
      %v2641 = vshrl.u32 %v2640, 7
      %v2642 = vsub.s32 0, %v2641
      %v2643 = vrot.slane %v2638, %v2642
      %v2654 = vunpack.c.l.b16 %v2629
      %v2655 = vunpack.c.l.b16 %v2630
      %v2656 = vunpack.c.l.b16 %v2631
      %v2657 = vunpack.c.l.b16 %v2632
      %v2658 = vunpack.c.l.b16 %v2633
      %v2659 = vunpack.c.l.b16 %v2634
      %v2660 = vunpack.c.l.b16 %v2635
      %v2661 = vunpack.c.l.b16 %v2636
      %v2662 = vunpack.c.l.b16 %v2637
      %v2663 = vpack.c.b16 %v2655, %v2654
      %v2664 = vpack.c.b16 %v2657, %v2656
      %v2665 = vpack.c.b16 %v2659, %v2658
      %v2666 = vpack.c.b16 %v2661, %v2660
      %v2667 = vpack.c.b16 %v2662, %v2662
      %vm2672 = vcmask 588800
      %v2673 = vsel %vm2672, %v2614, 0
      %v2675 = vsel %vm2672, %v2616, 0
      %v2677 = vsel %vm2672, %v2618, 0
      %v2679 = vsel %vm2672, %v2620, 0
      %v2681 = vsel %vm2672, %v2622, 0
      %v2683 = vsel %vm2672, %v2624, 0
      %v2685 = vsel %vm2672, %v2626, 0
      %v2687 = vsel %vm2672, %v2628, 0
      %vm2689 = vcmask 1043456
      %v2691 = vsel %vm2689, %v2667, 0
      %2693 = vmatprep.subr.bf16.mxu0 0
      %2694 = vmatpush1.bf16.msra.mxu0 %v2663
      %2695 = vmatprep.subr.bf16.mxu0 0
      %2696 = vmatpush1.bf16.msra.mxu0 %v2664
      %2697 = vmatprep.subr.bf16.mxu0 0
      %2698 = vmatpush1.bf16.msra.mxu0 %v2665
      %2699 = vmatprep.subr.bf16.mxu0 0
      %2700 = vmatpush1.bf16.msra.mxu0 %v2666
      %2701 = vmatprep.subr.bf16.mxu0 0
      %2702 = vmatpush1.bf16.msra.mxu0 %v2691
      %2703 = vmatprep.subr.bf16.mxu0 0
      %2704 = vmatpush1.bf16.msra.mxu0 0
      %2705 = vmatprep.subr.bf16.mxu0 0
      %2706 = vmatpush1.bf16.msra.mxu0 0
      %2707 = vmatprep.subr.bf16.mxu0 0
      %2708 = vmatpush1.bf16.msra.mxu0 0
      %2709 = vmatprep.subr.bf16.mxu0 0
      %2710 = vmatpush1.bf16.msra.mxu0 0
      %2711 = vmatprep.subr.bf16.mxu0 0
      %2712 = vmatpush1.bf16.msra.mxu0 0
      %2713 = vmatprep.subr.bf16.mxu0 0
      %2714 = vmatpush1.bf16.msra.mxu0 0
      %2715 = vmatprep.subr.bf16.mxu0 0
      %2716 = vmatpush1.bf16.msra.mxu0 0
      %2717 = vmatprep.subr.bf16.mxu0 0
      %2718 = vmatpush1.bf16.msra.mxu0 0
      %2719 = vmatprep.subr.bf16.mxu0 0
      %2720 = vmatpush1.bf16.msra.mxu0 0
      %2721 = vmatprep.subr.bf16.mxu0 0
      %2722 = vmatpush1.bf16.msra.mxu0 0
      %2723 = vmatprep.subr.bf16.mxu0 0
      %2724 = vmatpush1.bf16.msra.mxu0 0
      %2725 = vmatprep.mubr.bf16.mxu0 0
      %2726 = vmatmul.mubr.bf16.gmra.mrb[0].mxu0 %v2673
      %v2727 = vpop.f32.mrb[0].mxu0
      %v2728 = vadd.f32 %v2643, %v2727
      %v2729 = vpop.f32.mrb[0].mxu0
      %v2730 = vpop.f32.mrb[0].mxu0
      %v2731 = vpop.f32.mrb[0].mxu0
      %2732 = vmatprep.mubr.bf16.mxu0 0
      %2733 = vmatmul.mubr.bf16.gmra.mrb[0].mxu0 %v2675
      %v2734 = vpop.f32.mrb[0].mxu0
      %v2735 = vadd.f32 %v2643, %v2734
      %v2736 = vpop.f32.mrb[0].mxu0
      %v2737 = vpop.f32.mrb[0].mxu0
      %v2738 = vpop.f32.mrb[0].mxu0
      %2739 = vmatprep.mubr.bf16.mxu0 0
      %2740 = vmatmul.mubr.bf16.gmra.mrb[0].mxu0 %v2677
      %v2741 = vpop.f32.mrb[0].mxu0
      %v2742 = vadd.f32 %v2643, %v2741
      %v2743 = vpop.f32.mrb[0].mxu0
      %v2744 = vpop.f32.mrb[0].mxu0
      %v2745 = vpop.f32.mrb[0].mxu0
      %2746 = vmatprep.mubr.bf16.mxu0 0
      %2747 = vmatmul.mubr.bf16.gmra.mrb[0].mxu0 %v2679
      %v2748 = vpop.f32.mrb[0].mxu0
      %v2749 = vadd.f32 %v2643, %v2748
      %v2750 = vpop.f32.mrb[0].mxu0
      %v2751 = vpop.f32.mrb[0].mxu0
      %v2752 = vpop.f32.mrb[0].mxu0
      %2753 = vmatprep.mubr.bf16.mxu0 0
      %2754 = vmatmul.mubr.bf16.gmra.mrb[0].mxu0 %v2681
      %v2755 = vpop.f32.mrb[0].mxu0
      %v2756 = vadd.f32 %v2643, %v2755
      %v2757 = vpop.f32.mrb[0].mxu0
      %v2758 = vpop.f32.mrb[0].mxu0
      %v2759 = vpop.f32.mrb[0].mxu0
      %2760 = vmatprep.mubr.bf16.mxu0 0
      %2761 = vmatmul.mubr.bf16.gmra.mrb[0].mxu0 %v2683
      %v2762 = vpop.f32.mrb[0].mxu0
      %v2763 = vadd.f32 %v2643, %v2762
      %v2764 = vpop.f32.mrb[0].mxu0
      %v2765 = vpop.f32.mrb[0].mxu0
      %v2766 = vpop.f32.mrb[0].mxu0
      %2767 = vmatprep.mubr.bf16.mxu0 0
      %2768 = vmatmul.mubr.bf16.gmra.mrb[0].mxu0 %v2685
      %v2769 = vpop.f32.mrb[0].mxu0
      %v2770 = vadd.f32 %v2643, %v2769
      %v2771 = vpop.f32.mrb[0].mxu0
      %v2772 = vpop.f32.mrb[0].mxu0
      %v2773 = vpop.f32.mrb[0].mxu0
      %2774 = vmatprep.mubr.bf16.mxu0 0
      %2775 = vmatmul.mubr.bf16.gmra.mrb[0].mxu0 %v2687
      %v2776 = vpop.f32.mrb[0].mxu0
      %v2777 = vadd.f32 %v2643, %v2776
      %v2778 = vpop.f32.mrb[0].mxu0
      %v2779 = vpop.f32.mrb[0].mxu0
      %v2780 = vpop.f32.mrb[0].mxu0
      %2781 = vdwg.mxu0
      %v2782 = vld [vmem:[%s410] sm:$0xf]
      %v2783 = vld [vmem:[%s410 + $0x4] sm:$0xf]
      %v2784 = vld [vmem:[%s410 + $0xc] sm:$0xf]
      %v2785 = vld [vmem:[%s410 + $0x10] sm:$0xf]
      %v2786 = vld [vmem:[%s410 + $0x18] sm:$0xf]
      %v2787 = vld [vmem:[%s410 + $0x1c] sm:$0xf]
      %v2788 = vld [vmem:[%s410 + $0x24] sm:$0xf]
      %v2789 = vld [vmem:[%s410 + $0x28] sm:$0xf]
      %v2790 = vld [vmem:[%s410 + $0x30] sm:$0xf]
      %v2791 = vld [vmem:[%s410 + $0x34] sm:$0xf]
      %v2792 = vld [vmem:[%s410 + $0x3c] sm:$0xf]
      %v2793 = vld [vmem:[%s410 + $0x40] sm:$0xf]
      %v2794 = vld [vmem:[%s410 + $0x48] sm:$0xf]
      %v2795 = vld [vmem:[%s410 + $0x4c] sm:$0xf]
      %v2796 = vld [vmem:[%s410 + $0x54] sm:$0xf]
      %v2797 = vld [vmem:[%s410 + $0x58] sm:$0xf]
      %v2798 = vld [vmem:[%s5] sm:$0x3]
      %v2799 = vld [vmem:[%s6] sm:$0x1]
      %v2801 = vlaneseq
      %v2802 = vshrl.u32 %v2801, 7
      %v2803 = vsub.s32 0, %v2802
      %v2804 = vrot.slane %v2799, %v2803
      %v2822 = vunpack.c.l.b16 %v2782
      %v2823 = vunpack.c.l.b16 %v2783
      %v2824 = vunpack.c.l.b16 %v2784
      %v2825 = vunpack.c.l.b16 %v2785
      %v2826 = vunpack.c.l.b16 %v2786
      %v2827 = vunpack.c.l.b16 %v2787
      %v2828 = vunpack.c.l.b16 %v2788
      %v2829 = vunpack.c.l.b16 %v2789
      %v2830 = vunpack.c.l.b16 %v2790
      %v2831 = vunpack.c.l.b16 %v2791
      %v2832 = vunpack.c.l.b16 %v2792
      %v2833 = vunpack.c.l.b16 %v2793
      %v2834 = vunpack.c.l.b16 %v2794
      %v2835 = vunpack.c.l.b16 %v2795
      %v2836 = vunpack.c.l.b16 %v2796
      %v2837 = vunpack.c.l.b16 %v2797
      %v2838 = vpack.c.b16 %v2823, %v2822
      %v2839 = vpack.c.b16 %v2825, %v2824
      %v2840 = vpack.c.b16 %v2827, %v2826
      %v2841 = vpack.c.b16 %v2829, %v2828
      %v2842 = vpack.c.b16 %v2831, %v2830
      %v2843 = vpack.c.b16 %v2833, %v2832
      %v2844 = vpack.c.b16 %v2835, %v2834
      %v2845 = vpack.c.b16 %v2837, %v2836
      %v2847 = vsel %vm1206, %v2838, 0
      %v2850 = vsel %vm1206, %v2839, 0
      %v2853 = vsel %vm1206, %v2840, 0
      %v2856 = vsel %vm1206, %v2841, 0
      %v2859 = vsel %vm1206, %v2842, 0
      %v2862 = vsel %vm1206, %v2843, 0
      %v2865 = vsel %vm1206, %v2844, 0
      %v2868 = vsel %vm1206, %v2845, 0
      %v2871 = vsel %vm1386, %v2798, 0
      %2873 = vmatprep.subr.bf16.mxu0 0
      %2874 = vmatpush1.bf16.msra.mxu0 %v2871
      %2875 = vmatprep.subr.bf16.mxu0 0
      %2876 = vmatpush1.bf16.msra.mxu0 0
      %2877 = vmatprep.subr.bf16.mxu0 0
      %2878 = vmatpush1.bf16.msra.mxu0 0
      %2879 = vmatprep.subr.bf16.mxu0 0
      %2880 = vmatpush1.bf16.msra.mxu0 0
      %2881 = vmatprep.subr.bf16.mxu0 0
      %2882 = vmatpush1.bf16.msra.mxu0 0
      %2883 = vmatprep.subr.bf16.mxu0 0
      %2884 = vmatpush1.bf16.msra.mxu0 0
      %2885 = vmatprep.subr.bf16.mxu0 0
      %2886 = vmatpush1.bf16.msra.mxu0 0
      %2887 = vmatprep.subr.bf16.mxu0 0
      %2888 = vmatpush1.bf16.msra.mxu0 0
      %2889 = vmatprep.subr.bf16.mxu0 0
      %2890 = vmatpush1.bf16.msra.mxu0 0
      %2891 = vmatprep.subr.bf16.mxu0 0
      %2892 = vmatpush1.bf16.msra.mxu0 0
      %2893 = vmatprep.subr.bf16.mxu0 0
      %2894 = vmatpush1.bf16.msra.mxu0 0
      %2895 = vmatprep.subr.bf16.mxu0 0
      %2896 = vmatpush1.bf16.msra.mxu0 0
      %2897 = vmatprep.subr.bf16.mxu0 0
      %2898 = vmatpush1.bf16.msra.mxu0 0
      %2899 = vmatprep.subr.bf16.mxu0 0
      %2900 = vmatpush1.bf16.msra.mxu0 0
      %2901 = vmatprep.subr.bf16.mxu0 0
      %2902 = vmatpush1.bf16.msra.mxu0 0
      %2903 = vmatprep.subr.bf16.mxu0 0
      %2904 = vmatpush1.bf16.msra.mxu0 0
      %2905 = vmatprep.mubr.bf16.mxu0 0
      %2906 = vmatmul.mubr.bf16.gmra.mrb[0].mxu0 %v2847
      %v2907 = vpop.f32.mrb[0].mxu0
      %v2908 = vadd.f32 %v2804, %v2907
      %v2909 = vpop.f32.mrb[0].mxu0
      %v2910 = vpop.f32.mrb[0].mxu0
      %v2911 = vpop.f32.mrb[0].mxu0
      %2912 = vmatprep.mubr.bf16.mxu0 0
      %2913 = vmatmul.mubr.bf16.gmra.mrb[0].mxu0 %v2850
      %v2914 = vpop.f32.mrb[0].mxu0
      %v2915 = vadd.f32 %v2804, %v2914
      %v2916 = vpop.f32.mrb[0].mxu0
      %v2917 = vpop.f32.mrb[0].mxu0
      %v2918 = vpop.f32.mrb[0].mxu0
      %2919 = vmatprep.mubr.bf16.mxu0 0
      %2920 = vmatmul.mubr.bf16.gmra.mrb[0].mxu0 %v2853
      %v2921 = vpop.f32.mrb[0].mxu0
      %v2922 = vadd.f32 %v2804, %v2921
      %v2923 = vpop.f32.mrb[0].mxu0
      %v2924 = vpop.f32.mrb[0].mxu0
      %v2925 = vpop.f32.mrb[0].mxu0
      %2926 = vmatprep.mubr.bf16.mxu0 0
      %2927 = vmatmul.mubr.bf16.gmra.mrb[0].mxu0 %v2856
      %v2928 = vpop.f32.mrb[0].mxu0
      %v2929 = vadd.f32 %v2804, %v2928
      %v2930 = vpop.f32.mrb[0].mxu0
      %v2931 = vpop.f32.mrb[0].mxu0
      %v2932 = vpop.f32.mrb[0].mxu0
      %2933 = vmatprep.mubr.bf16.mxu0 0
      %2934 = vmatmul.mubr.bf16.gmra.mrb[0].mxu0 %v2859
      %v2935 = vpop.f32.mrb[0].mxu0
      %v2936 = vadd.f32 %v2804, %v2935
      %v2937 = vpop.f32.mrb[0].mxu0
      %v2938 = vpop.f32.mrb[0].mxu0
      %v2939 = vpop.f32.mrb[0].mxu0
      %2940 = vmatprep.mubr.bf16.mxu0 0
      %2941 = vmatmul.mubr.bf16.gmra.mrb[0].mxu0 %v2862
      %v2942 = vpop.f32.mrb[0].mxu0
      %v2943 = vadd.f32 %v2804, %v2942
      %v2944 = vpop.f32.mrb[0].mxu0
      %v2945 = vpop.f32.mrb[0].mxu0
      %v2946 = vpop.f32.mrb[0].mxu0
      %2947 = vmatprep.mubr.bf16.mxu0 0
      %2948 = vmatmul.mubr.bf16.gmra.mrb[0].mxu0 %v2865
      %v2949 = vpop.f32.mrb[0].mxu0
      %v2950 = vadd.f32 %v2804, %v2949
      %v2951 = vpop.f32.mrb[0].mxu0
      %v2952 = vpop.f32.mrb[0].mxu0
      %v2953 = vpop.f32.mrb[0].mxu0
      %2954 = vmatprep.mubr.bf16.mxu0 0
      %2955 = vmatmul.mubr.bf16.gmra.mrb[0].mxu0 %v2868
      %v2956 = vpop.f32.mrb[0].mxu0
      %v2957 = vadd.f32 %v2804, %v2956
      %v2958 = vpop.f32.mrb[0].mxu0
      %v2959 = vpop.f32.mrb[0].mxu0
      %v2960 = vpop.f32.mrb[0].mxu0
      %2961 = vdwg.mxu0
      %v2962 = vadd.f32 %v2728, %v2908
      %v2963 = vadd.f32 %v2735, %v2915
      %v2964 = vadd.f32 %v2742, %v2922
      %v2965 = vadd.f32 %v2749, %v2929
      %v2966 = vadd.f32 %v2756, %v2936
      %v2967 = vadd.f32 %v2763, %v2943
      %v2968 = vadd.f32 %v2770, %v2950
      %v2969 = vadd.f32 %v2777, %v2957
      %v2970 = vmax.f32 %v2962, 0.0
      %v2971 = vmax.f32 %v2963, 0.0
      %v2972 = vmax.f32 %v2964, 0.0
      %v2973 = vmax.f32 %v2965, 0.0
      %v2974 = vmax.f32 %v2966, 0.0
      %v2975 = vmax.f32 %v2967, 0.0
      %v2976 = vmax.f32 %v2968, 0.0
      %v2977 = vmax.f32 %v2969, 0.0
      %2978 = vst.msk [vmem:[%s278] sm:$0xff] %vm1223, %v2970
      %2979 = vst.msk [vmem:[%s278 + $0x8] sm:$0xff] %vm1223, %v2971
      %2980 = vst.msk [vmem:[%s278 + $0x10] sm:$0xff] %vm1223, %v2972
      %2981 = vst.msk [vmem:[%s278 + $0x18] sm:$0xff] %vm1223, %v2973
      %2982 = vst.msk [vmem:[%s278 + $0x20] sm:$0xff] %vm1223, %v2974
      %2983 = vst.msk [vmem:[%s278 + $0x28] sm:$0xff] %vm1223, %v2975
      %2984 = vst.msk [vmem:[%s278 + $0x30] sm:$0xff] %vm1223, %v2976
      %2985 = vst.msk [vmem:[%s278 + $0x38] sm:$0xff] %vm1223, %v2977
      %p2986 = scmp.lt.s32.totalorder %s18, 1
      %s2987 = scalar_select %p2986, %s18, 1
      %s2988 = smul.addr %s2987, 8
      %s2989 = smul.addr %s2988, 8
      %s2990 = scalar_lea.vmem %s7, %s2989
      // Predicated region
      $region49: #{basic_block_forward.1} parent=47 // pred_check
        %p2991 = pneg %p188
      $region50: #{basic_block_forward.1} parent=47 // pred_check_branch
        %2993 = sbr.rel (%p2991) target = $region52
      $region51: #{basic_block_forward.1} parent=47 // pred_region
        _
      $region52: #{basic_block_forward.1} parent=47 // pred_fallthru
        _
    $region48: #{basic_block_forward.1} parent=5 // pred_fallthru
      _
    %p2994 = scmp.le.s32.totalorder 2, %s13
    // Predicated region
    $region53: #{basic_block_forward.1} parent=5 // pred_check
      %p2995 = pneg %p2994
    $region54: #{basic_block_forward.1} parent=5 // pred_check_branch
      %2997 = sbr.rel (%p2995) target = $region56
    $region55: #{basic_block_forward.1} parent=5 // pred_region
      %s2998 = ssub.s32 %s13, 2
      // Predicated region
      $region57: #{basic_block_forward.1} parent=55 // pred_check
        %p2999 = pneg %p194
      $region58: #{basic_block_forward.1} parent=55 // pred_check_branch
        %3001 = sbr.rel (%p2999) target = $region60
      $region59: #{basic_block_forward.1} parent=55 // pred_region
        %p3002 = scmp.lt.s32.totalorder %s19, 1
        %s3003 = scalar_select %p3002, %s19, 1
        %s3004 = smul.addr %s3003, 8
        %s3005 = smul.addr %s3004, 8
        %s3006 = scalar_lea.vmem %s7, %s3005
      $region60: #{basic_block_forward.1} parent=55 // pred_fallthru
        _
    $region56: #{basic_block_forward.1} parent=5 // pred_fallthru
      _
  $region6: #{basic_block_forward.1} parent=0 // loop_footer
    %s17 = sadd.s32 1, %s13
  $region7: #{basic_block_forward.1} parent=0 // loop_footer_branch
    %12 = sbr.rel target = $region3
  $region8: #{basic_block_forward.1} parent=0 // loop_exit
    _

</llo_original>
